<compile_context>
chip_gen: v6e
topology: v6e:2x2x1
jax: 0.10.0
libtpu: 0.0.40
codegen_flags: <defaults>
</compile_context>

<pallas_src>
import functools

import jax
import jax.numpy as jnp
import numpy as np
from jax.experimental import pallas as pl
from jax.experimental.pallas import tpu as pltpu  # noqa: F401  (used when scaling up)


# ----------------------------------------------------------------------------
# Static layout of the packed parameter slabs (name -> (slot, dout, din)).
# ----------------------------------------------------------------------------
def _layouts(input_dim, big_dim, hidden_dim):
    B, H, I = big_dim, hidden_dim, input_dim
    worder = [("ew1", B, I), ("ew2", B, B), ("ew3", B, B),
              ("cw1d", B, B), ("cw1b", B, B), ("cw2", B, B), ("cw3", H, B),
              ("dw1a", B, H), ("dw1b", B, H), ("dw2", B, B), ("dw3", B, B),
              ("uw1", B, B), ("uw2", B, B), ("uw3", I, B)]
    border = [("eb1", B), ("eb2", B), ("eb3", B),
              ("cb1", B), ("cb2", B), ("cb3", H),
              ("db1", B), ("db2", B), ("db3", B),
              ("ub1", B), ("ub2", B), ("ub3", I),
              ("gamma", I), ("beta", I)]
    wlay = {n: (i, dout, din) for i, (n, dout, din) in enumerate(worder)}
    blay = {n: (i, dout) for i, (n, dout) in enumerate(border)}
    return wlay, blay


def _pad2(a, rows, cols):
    return jnp.pad(a, ((0, rows - a.shape[0]), (0, cols - a.shape[1])))


def _pack_params(params, input_dim, big_dim, hidden_dim):
    """Pack all weights/biases into two slabs, feature-major (transposed)."""
    (ew1, eb1), (ew2, eb2), (ew3, eb3) = params["embed"]
    (cw1, cb1), (cw2, cb2), (cw3, cb3) = params["enc"]
    (dw1, db1), (dw2, db2), (dw3, db3) = params["dec"]
    (uw1, ub1), (uw2, ub2), (uw3, ub3) = params["deembed"]
    B, H = big_dim, hidden_dim
    dmax = max(big_dim, input_dim, hidden_dim)

    cw1a, cw1b = cw1[:B], cw1[B:]           # encoder W1 split: [x_i | x_j - x_i]
    dw1a, dw1b = dw1[:H], dw1[H:]           # decoder W1 split

    wmats = {  # feature-major (Dout, Din); encoder layer-1 pre-reassociated to (W1a - W1b)
        "ew1": ew1.T, "ew2": ew2.T, "ew3": ew3.T,
        "cw1d": (cw1a - cw1b).T, "cw1b": cw1b.T, "cw2": cw2.T, "cw3": cw3.T,
        "dw1a": dw1a.T, "dw1b": dw1b.T, "dw2": dw2.T, "dw3": dw3.T,
        "uw1": uw1.T, "uw2": uw2.T, "uw3": uw3.T,
    }
    bvecs = {
        "eb1": eb1, "eb2": eb2, "eb3": eb3,
        "cb1": cb1, "cb2": cb2, "cb3": cb3,
        "db1": db1, "db2": db2, "db3": db3,
        "ub1": ub1, "ub2": ub2, "ub3": ub3,
        "gamma": params["bn_gamma"], "beta": params["bn_beta"],
    }
    wlay, blay = _layouts(input_dim, big_dim, hidden_dim)
    w_slab = jnp.stack([_pad2(wmats[n], dmax, dmax) for n in wlay], axis=0)   # (14,dmax,dmax)
    b_slab = jnp.stack([_pad2(bvecs[n].T, dmax, 1) for n in blay], axis=0)    # (14,dmax,1)
    return w_slab, b_slab, wlay, blay


# ----------------------------------------------------------------------------
# Fused forward kernel (everything feature-major: (features, nodes/edges)).
# ----------------------------------------------------------------------------
def _fused_kernel(x_ref, idx_ref, w_ref, b_ref, o_ref, *, wlay, blay):
    N = x_ref.shape[1]
    E = idx_ref.shape[1] // 2

    def W(name):                                    # (Dout, Din) weight slice
        i, dout, din = wlay[name]
        return w_ref[i, 0:dout, 0:din]

    def Bv(name):                                   # (Dout, 1) bias column
        i, dout = blay[name]
        return b_ref[i, 0:dout, :]

    def dot(a, b):
        return jnp.dot(a, b, preferred_element_type=jnp.float32)

    def relu(v):
        return jnp.maximum(v, 0.0)

    # ---- training-mode BatchNorm1d (batch stats, biased variance, eps=1e-5) ----
    x = x_ref[...]                                                  # (input_dim, N)
    mean = jnp.mean(x, axis=1, keepdims=True)
    var = jnp.mean((x - mean) * (x - mean), axis=1, keepdims=True)
    xn = (x - mean) / jnp.sqrt(var + 1e-5) * Bv("gamma") + Bv("beta")

    # ---- graph structure from the single (1, 2E) = [dst | src] index row ----
    rows = jax.lax.broadcasted_iota(jnp.int32, (N, 2 * E), 0)
    s_both = (idx_ref[...] == rows).astype(jnp.float32)             # (N, 2E) one-hots
    s_dst = s_both[:, :E]                                           # col e hot at node dst[e]
    s_src = s_both[:, E:]                                           # col e hot at node src[e]
    deg = jnp.maximum(jnp.sum(s_dst, axis=1, keepdims=True), 1.0)   # (N, 1)
    s_mean = s_dst * pl.reciprocal(deg, approx=False)               # scatter-mean matrix

    def scatter_mean(msgs):                                         # (D, E) -> (D, N)
        return jax.lax.dot_general(msgs, s_mean, (((1,), (1,)), ((), ())),
                                   preferred_element_type=jnp.float32)

    # ---- embed_nn: Linear/ReLU x3 ----
    h = relu(dot(W("ew1"), xn) + Bv("eb1"))
    h = relu(dot(W("ew2"), h) + Bv("eb2"))
    h = relu(dot(W("ew3"), h) + Bv("eb3"))                          # (big, N)

    # ---- encoder EdgeConv (mean aggr), layer-1 reassociated to node-side products:
    #      relu(W1a@x_i + W1b@(x_j-x_i) + b) == relu(((W1a-W1b)@h)[dst] + (W1b@h)[src] + b)
    p = dot(W("cw1d"), h)                                           # (big, N)
    q = dot(W("cw1b"), h)                                           # (big, N)
    m = relu(dot(p, s_dst) + dot(q, s_src) + Bv("cb1"))             # (big, E)
    m = relu(dot(W("cw2"), m) + Bv("cb2"))
    m = relu(dot(W("cw3"), m) + Bv("cb3"))                          # (hidden, E)
    h = scatter_mean(m)                                             # (hidden, N)

    # ---- decoder EdgeConv: hidden is tiny -> one fused gather for x_i and x_j ----
    xij = dot(h, s_both)                                            # (hidden, 2E)
    x_i, x_j = xij[:, :E], xij[:, E:]
    m = relu(dot(W("dw1a"), x_i) + dot(W("dw1b"), x_j - x_i) + Bv("db1"))   # (big, E)
    m = relu(dot(W("dw2"), m) + Bv("db2"))
    m = relu(dot(W("dw3"), m) + Bv("db3"))                          # (big, E)
    h = scatter_mean(m)                                             # (big, N)

    # ---- deembed_nn: Linear/ReLU, Linear/ReLU, Linear (no final ReLU) ----
    h = relu(dot(W("uw1"), h) + Bv("ub1"))
    h = relu(dot(W("uw2"), h) + Bv("ub2"))
    o_ref[...] = dot(W("uw3"), h) + Bv("ub3")                       # (input_dim, N)


# ----------------------------------------------------------------------------
# Wrapper: one pallas_call, no grid (whole problem resident in VMEM/vregs).
# ----------------------------------------------------------------------------
@jax.jit
def edgenet_embed_forward(x, edge_index, params):
    N, input_dim = x.shape
    src, dst = edge_index[0], edge_index[1]        # PyG: x_j = x[src], x_i = x[dst]
    E = src.shape[0]
    big_dim = params["embed"][2][0].shape[1]
    hidden_dim = params["enc"][2][0].shape[1]

    w_slab, b_slab, wlay, blay = _pack_params(params, input_dim, big_dim, hidden_dim)
    idx2 = jnp.concatenate([dst, src]).astype(jnp.int32).reshape(1, 2 * E)  # lane-major [dst|src]
    x_fm = x.T                                                              # feature-major (free)

    kernel = functools.partial(_fused_kernel, wlay=wlay, blay=blay)

    B, H, I = big_dim, hidden_dim, input_dim
    mm = lambda dout, k, n: 2 * dout * k * n
    flops = (mm(B, I, N) + 2 * mm(B, B, N)                    # embed
             + 2 * mm(B, B, N) + 2 * mm(B, N, E)              # encoder layer-1 (node-side + gathers)
             + mm(B, B, E) + mm(H, B, E) + mm(H, E, N)        # encoder layers 2-3 + scatter
             + mm(H, N, 2 * E) + 2 * mm(B, H, E)              # decoder gather + layer-1
             + 2 * mm(B, B, E) + mm(B, E, N)                  # decoder layers 2-3 + scatter
             + 2 * mm(B, B, N) + mm(I, B, N))                 # deembed
    bytes_accessed = 4 * (x.size + idx2.size + w_slab.size + b_slab.size + N * I)

    out_fm = pl.pallas_call(
        kernel,
        out_shape=jax.ShapeDtypeStruct((input_dim, N), jnp.float32),
        cost_estimate=pl.CostEstimate(flops=int(flops), transcendentals=0,
                                      bytes_accessed=int(bytes_accessed)),
    )(x_fm, idx2, w_slab, b_slab)
    return out_fm.T                                                          # back to (N, input_dim)


# ----------------------------------------------------------------------------
# Deterministic synthetic parameters.
# ----------------------------------------------------------------------------
def _linear_params(key, din, dout):
    kw, kb = jax.random.split(key)
    lim = 1.0 / np.sqrt(din)
    w = jax.random.uniform(kw, (din, dout), jnp.float32, -lim, lim)
    b = jax.random.uniform(kb, (1, dout), jnp.float32, -lim, lim)
    return w, b


def make_params(key, input_dim=4, big_dim=32, hidden_dim=2):
    keys = jax.random.split(key, 12)
    p = {}
    p["embed"] = [_linear_params(keys[0], input_dim, big_dim),
                  _linear_params(keys[1], big_dim, big_dim),
                  _linear_params(keys[2], big_dim, big_dim)]
    p["enc"] = [_linear_params(keys[3], 2 * big_dim, big_dim),
                _linear_params(keys[4], big_dim, big_dim),
                _linear_params(keys[5], big_dim, hidden_dim)]
    p["dec"] = [_linear_params(keys[6], 2 * hidden_dim, big_dim),
                _linear_params(keys[7], big_dim, big_dim),
                _linear_params(keys[8], big_dim, big_dim)]
    p["deembed"] = [_linear_params(keys[9], big_dim, big_dim),
                    _linear_params(keys[10], big_dim, big_dim),
                    _linear_params(keys[11], big_dim, input_dim)]
    p["bn_gamma"] = jnp.ones((1, input_dim), jnp.float32)
    p["bn_beta"] = jnp.zeros((1, input_dim), jnp.float32)
    return p


# ----------------------------------------------------------------------------
# Pure-JAX reference (torch_geometric EdgeConv semantics) for checking.
# ----------------------------------------------------------------------------
def ref_forward(x, edge_index, params):
    N = x.shape[0]
    src, dst = edge_index[0], edge_index[1]
    E = src.shape[0]
    eps = 1e-5
    xn = (x - jnp.mean(x, 0)) / jnp.sqrt(jnp.var(x, 0) + eps)
    xn = xn * params["bn_gamma"] + params["bn_beta"]

    def mlp3(h, layers, final_relu=True):
        (w1, b1), (w2, b2), (w3, b3) = layers
        h = jax.nn.relu(h @ w1 + b1)
        h = jax.nn.relu(h @ w2 + b2)
        h = h @ w3 + b3
        return jax.nn.relu(h) if final_relu else h

    def econv(h, layers):
        xi, xj = h[dst], h[src]
        msg = mlp3(jnp.concatenate([xi, xj - xi], axis=-1), layers, final_relu=True)
        summed = jax.ops.segment_sum(msg, dst, num_segments=N)
        deg = jax.ops.segment_sum(jnp.ones((E,), jnp.float32), dst, num_segments=N)
        return summed / jnp.maximum(deg, 1.0)[:, None]

    h = mlp3(xn, params["embed"])
    h = econv(h, params["enc"])
    h = econv(h, params["dec"])
    return mlp3(h, params["deembed"], final_relu=False)


if __name__ == "__main__":
    N, E = 64, 256
    input_dim, big_dim, hidden_dim = 4, 32, 2

    key = jax.random.PRNGKey(0)
    kx, ks, kd, kp = jax.random.split(key, 4)
    x = jax.random.normal(kx, (N, input_dim), jnp.float32)
    src = jax.random.randint(ks, (E,), 0, N, jnp.int32)
    dst = jax.random.randint(kd, (E,), 0, N, jnp.int32)
    edge_index = jnp.stack([src, dst], axis=0)          # (2, E), PyG convention

    params = make_params(kp, input_dim, big_dim, hidden_dim)

    out = jax.block_until_ready(edgenet_embed_forward(x, edge_index, params))
    ref = jax.block_until_ready(ref_forward(x, edge_index, params))
    np.testing.assert_allclose(np.asarray(out), np.asarray(ref), rtol=1e-4, atol=1e-4)

    print("KERNEL_OK")
</pallas_src>

<mosaic_0001>
module attributes {stable_mosaic.version = 11 : i64} {
  func.func @_fused_kernel(%arg0: memref<4x64xf32, #tpu.memory_space<vmem>>, %arg1: memref<1x512xi32, #tpu.memory_space<vmem>>, %arg2: memref<14x32x32xf32, #tpu.memory_space<vmem>>, %arg3: memref<14x32x1xf32, #tpu.memory_space<vmem>>, %arg4: memref<4x64xf32, #tpu.memory_space<vmem>>) attributes {dimension_semantics = [], scalar_prefetch = 0 : i64, scratch_operands = 0 : i64, tpu.core_type = #tpu.core_type<tc>} {
    %c0 = arith.constant 0 : index
    %c0_0 = arith.constant 0 : index
    %0 = vector.load %arg0[%c0, %c0_0] : memref<4x64xf32, #tpu.memory_space<vmem>>, vector<4x64xf32>
    %cst = arith.constant dense<0.000000e+00> : vector<4xf32>
    %1 = vector.multi_reduction <add>, %0, %cst [1] : vector<4x64xf32> to vector<4xf32>
    %2 = vector.shape_cast %1 : vector<4xf32> to vector<4x1xf32>
    %cst_1 = arith.constant 6.400000e+01 : f32
    %3 = vector.broadcast %cst_1 : f32 to vector<4x1xf32>
    %4 = arith.divf %2, %3 : vector<4x1xf32>
    %5 = vector.broadcast %4 : vector<4x1xf32> to vector<4x64xf32>
    %6 = arith.subf %0, %5 : vector<4x64xf32>
    %7 = vector.broadcast %4 : vector<4x1xf32> to vector<4x64xf32>
    %8 = arith.subf %0, %7 : vector<4x64xf32>
    %9 = arith.mulf %6, %8 : vector<4x64xf32>
    %cst_2 = arith.constant dense<0.000000e+00> : vector<4xf32>
    %10 = vector.multi_reduction <add>, %9, %cst_2 [1] : vector<4x64xf32> to vector<4xf32>
    %11 = vector.shape_cast %10 : vector<4xf32> to vector<4x1xf32>
    %cst_3 = arith.constant 6.400000e+01 : f32
    %12 = vector.broadcast %cst_3 : f32 to vector<4x1xf32>
    %13 = arith.divf %11, %12 : vector<4x1xf32>
    %14 = vector.broadcast %4 : vector<4x1xf32> to vector<4x64xf32>
    %15 = arith.subf %0, %14 : vector<4x64xf32>
    %cst_4 = arith.constant 9.99999974E-6 : f32
    %16 = vector.broadcast %cst_4 : f32 to vector<4x1xf32>
    %17 = arith.addf %13, %16 : vector<4x1xf32>
    %18 = math.sqrt %17 : vector<4x1xf32>
    %19 = vector.broadcast %18 : vector<4x1xf32> to vector<4x64xf32>
    %20 = arith.divf %15, %19 : vector<4x64xf32>
    %c12 = arith.constant 12 : index
    %c0_5 = arith.constant 0 : index
    %c0_6 = arith.constant 0 : index
    %21 = vector.load %arg3[%c12, %c0_5, %c0_6] : memref<14x32x1xf32, #tpu.memory_space<vmem>>, vector<1x4x1xf32>
    %22 = vector.shape_cast %21 : vector<1x4x1xf32> to vector<4x1xf32>
    %23 = vector.broadcast %22 : vector<4x1xf32> to vector<4x64xf32>
    %24 = arith.mulf %20, %23 : vector<4x64xf32>
    %c13 = arith.constant 13 : index
    %c0_7 = arith.constant 0 : index
    %c0_8 = arith.constant 0 : index
    %25 = vector.load %arg3[%c13, %c0_7, %c0_8] : memref<14x32x1xf32, #tpu.memory_space<vmem>>, vector<1x4x1xf32>
    %26 = vector.shape_cast %25 : vector<1x4x1xf32> to vector<4x1xf32>
    %27 = vector.broadcast %26 : vector<4x1xf32> to vector<4x64xf32>
    %28 = arith.addf %24, %27 : vector<4x64xf32>
    %29 = tpu.iota {dimensions = array<i32: 0>} : vector<64x512xi32>
    %c0_9 = arith.constant 0 : index
    %c0_10 = arith.constant 0 : index
    %30 = vector.load %arg1[%c0_9, %c0_10] : memref<1x512xi32, #tpu.memory_space<vmem>>, vector<1x512xi32>
    %31 = vector.broadcast %30 : vector<1x512xi32> to vector<64x512xi32>
    %32 = arith.cmpi eq, %31, %29 : vector<64x512xi32>
    %33 = arith.extui %32 : vector<64x512xi1> to vector<64x512xi32>
    %34 = arith.sitofp %33 : vector<64x512xi32> to vector<64x512xf32>
    %35 = vector.extract_strided_slice %34 {offsets = [0, 0], sizes = [64, 256], strides = [1, 1]} : vector<64x512xf32> to vector<64x256xf32>
    %36 = vector.extract_strided_slice %34 {offsets = [0, 256], sizes = [64, 256], strides = [1, 1]} : vector<64x512xf32> to vector<64x256xf32>
    %cst_11 = arith.constant dense<0.000000e+00> : vector<64xf32>
    %37 = vector.multi_reduction <add>, %35, %cst_11 [1] : vector<64x256xf32> to vector<64xf32>
    %38 = vector.shape_cast %37 : vector<64xf32> to vector<64x1xf32>
    %cst_12 = arith.constant 1.000000e+00 : f32
    %39 = vector.broadcast %cst_12 : f32 to vector<64x1xf32>
    %40 = arith.maximumf %38, %39 : vector<64x1xf32>
    %41 = tpu.reciprocal %40 : vector<64x1xf32> -> vector<64x1xf32>
    %42 = vector.broadcast %41 : vector<64x1xf32> to vector<64x256xf32>
    %43 = arith.mulf %35, %42 : vector<64x256xf32>
    %c0_13 = arith.constant 0 : index
    %c0_14 = arith.constant 0 : index
    %c0_15 = arith.constant 0 : index
    %44 = vector.load %arg2[%c0_13, %c0_14, %c0_15] : memref<14x32x32xf32, #tpu.memory_space<vmem>>, vector<1x32x4xf32>
    %45 = vector.shape_cast %44 : vector<1x32x4xf32> to vector<32x4xf32>
    %cst_16 = arith.constant dense<0.000000e+00> : vector<32x64xf32>
    %46 = tpu.matmul %45, %28, %cst_16 {dimension_numbers = #tpu.dot_dimension_numbers<[1], [0], [0], [1], [0, 0, 1, 1], [], []>} : vector<32x4xf32>, vector<4x64xf32>, vector<32x64xf32> -> vector<32x64xf32>
    %c0_17 = arith.constant 0 : index
    %c0_18 = arith.constant 0 : index
    %c0_19 = arith.constant 0 : index
    %47 = vector.load %arg3[%c0_17, %c0_18, %c0_19] : memref<14x32x1xf32, #tpu.memory_space<vmem>>, vector<1x32x1xf32>
    %48 = vector.shape_cast %47 : vector<1x32x1xf32> to vector<32x1xf32>
    %49 = vector.broadcast %48 : vector<32x1xf32> to vector<32x64xf32>
    %50 = arith.addf %46, %49 : vector<32x64xf32>
    %cst_20 = arith.constant 0.000000e+00 : f32
    %51 = vector.broadcast %cst_20 : f32 to vector<32x64xf32>
    %52 = arith.maximumf %50, %51 : vector<32x64xf32>
    %c1 = arith.constant 1 : index
    %c0_21 = arith.constant 0 : index
    %c0_22 = arith.constant 0 : index
    %53 = vector.load %arg2[%c1, %c0_21, %c0_22] : memref<14x32x32xf32, #tpu.memory_space<vmem>>, vector<1x32x32xf32>
    %54 = vector.shape_cast %53 : vector<1x32x32xf32> to vector<32x32xf32>
    %cst_23 = arith.constant dense<0.000000e+00> : vector<32x64xf32>
    %55 = tpu.matmul %54, %52, %cst_23 {dimension_numbers = #tpu.dot_dimension_numbers<[1], [0], [0], [1], [0, 0, 1, 1], [], []>} : vector<32x32xf32>, vector<32x64xf32>, vector<32x64xf32> -> vector<32x64xf32>
    %c1_24 = arith.constant 1 : index
    %c0_25 = arith.constant 0 : index
    %c0_26 = arith.constant 0 : index
    %56 = vector.load %arg3[%c1_24, %c0_25, %c0_26] : memref<14x32x1xf32, #tpu.memory_space<vmem>>, vector<1x32x1xf32>
    %57 = vector.shape_cast %56 : vector<1x32x1xf32> to vector<32x1xf32>
    %58 = vector.broadcast %57 : vector<32x1xf32> to vector<32x64xf32>
    %59 = arith.addf %55, %58 : vector<32x64xf32>
    %cst_27 = arith.constant 0.000000e+00 : f32
    %60 = vector.broadcast %cst_27 : f32 to vector<32x64xf32>
    %61 = arith.maximumf %59, %60 : vector<32x64xf32>
    %c2 = arith.constant 2 : index
    %c0_28 = arith.constant 0 : index
    %c0_29 = arith.constant 0 : index
    %62 = vector.load %arg2[%c2, %c0_28, %c0_29] : memref<14x32x32xf32, #tpu.memory_space<vmem>>, vector<1x32x32xf32>
    %63 = vector.shape_cast %62 : vector<1x32x32xf32> to vector<32x32xf32>
    %cst_30 = arith.constant dense<0.000000e+00> : vector<32x64xf32>
    %64 = tpu.matmul %63, %61, %cst_30 {dimension_numbers = #tpu.dot_dimension_numbers<[1], [0], [0], [1], [0, 0, 1, 1], [], []>} : vector<32x32xf32>, vector<32x64xf32>, vector<32x64xf32> -> vector<32x64xf32>
    %c2_31 = arith.constant 2 : index
    %c0_32 = arith.constant 0 : index
    %c0_33 = arith.constant 0 : index
    %65 = vector.load %arg3[%c2_31, %c0_32, %c0_33] : memref<14x32x1xf32, #tpu.memory_space<vmem>>, vector<1x32x1xf32>
    %66 = vector.shape_cast %65 : vector<1x32x1xf32> to vector<32x1xf32>
    %67 = vector.broadcast %66 : vector<32x1xf32> to vector<32x64xf32>
    %68 = arith.addf %64, %67 : vector<32x64xf32>
    %cst_34 = arith.constant 0.000000e+00 : f32
    %69 = vector.broadcast %cst_34 : f32 to vector<32x64xf32>
    %70 = arith.maximumf %68, %69 : vector<32x64xf32>
    %c3 = arith.constant 3 : index
    %c0_35 = arith.constant 0 : index
    %c0_36 = arith.constant 0 : index
    %71 = vector.load %arg2[%c3, %c0_35, %c0_36] : memref<14x32x32xf32, #tpu.memory_space<vmem>>, vector<1x32x32xf32>
    %72 = vector.shape_cast %71 : vector<1x32x32xf32> to vector<32x32xf32>
    %cst_37 = arith.constant dense<0.000000e+00> : vector<32x64xf32>
    %73 = tpu.matmul %72, %70, %cst_37 {dimension_numbers = #tpu.dot_dimension_numbers<[1], [0], [0], [1], [0, 0, 1, 1], [], []>} : vector<32x32xf32>, vector<32x64xf32>, vector<32x64xf32> -> vector<32x64xf32>
    %c4 = arith.constant 4 : index
    %c0_38 = arith.constant 0 : index
    %c0_39 = arith.constant 0 : index
    %74 = vector.load %arg2[%c4, %c0_38, %c0_39] : memref<14x32x32xf32, #tpu.memory_space<vmem>>, vector<1x32x32xf32>
    %75 = vector.shape_cast %74 : vector<1x32x32xf32> to vector<32x32xf32>
    %cst_40 = arith.constant dense<0.000000e+00> : vector<32x64xf32>
    %76 = tpu.matmul %75, %70, %cst_40 {dimension_numbers = #tpu.dot_dimension_numbers<[1], [0], [0], [1], [0, 0, 1, 1], [], []>} : vector<32x32xf32>, vector<32x64xf32>, vector<32x64xf32> -> vector<32x64xf32>
    %cst_41 = arith.constant dense<0.000000e+00> : vector<32x256xf32>
    %77 = tpu.matmul %73, %35, %cst_41 {dimension_numbers = #tpu.dot_dimension_numbers<[1], [0], [0], [1], [0, 0, 1, 1], [], []>} : vector<32x64xf32>, vector<64x256xf32>, vector<32x256xf32> -> vector<32x256xf32>
    %cst_42 = arith.constant dense<0.000000e+00> : vector<32x256xf32>
    %78 = tpu.matmul %76, %36, %cst_42 {dimension_numbers = #tpu.dot_dimension_numbers<[1], [0], [0], [1], [0, 0, 1, 1], [], []>} : vector<32x64xf32>, vector<64x256xf32>, vector<32x256xf32> -> vector<32x256xf32>
    %79 = arith.addf %77, %78 : vector<32x256xf32>
    %c3_43 = arith.constant 3 : index
    %c0_44 = arith.constant 0 : index
    %c0_45 = arith.constant 0 : index
    %80 = vector.load %arg3[%c3_43, %c0_44, %c0_45] : memref<14x32x1xf32, #tpu.memory_space<vmem>>, vector<1x32x1xf32>
    %81 = vector.shape_cast %80 : vector<1x32x1xf32> to vector<32x1xf32>
    %82 = vector.broadcast %81 : vector<32x1xf32> to vector<32x256xf32>
    %83 = arith.addf %79, %82 : vector<32x256xf32>
    %cst_46 = arith.constant 0.000000e+00 : f32
    %84 = vector.broadcast %cst_46 : f32 to vector<32x256xf32>
    %85 = arith.maximumf %83, %84 : vector<32x256xf32>
    %c5 = arith.constant 5 : index
    %c0_47 = arith.constant 0 : index
    %c0_48 = arith.constant 0 : index
    %86 = vector.load %arg2[%c5, %c0_47, %c0_48] : memref<14x32x32xf32, #tpu.memory_space<vmem>>, vector<1x32x32xf32>
    %87 = vector.shape_cast %86 : vector<1x32x32xf32> to vector<32x32xf32>
    %cst_49 = arith.constant dense<0.000000e+00> : vector<32x256xf32>
    %88 = tpu.matmul %87, %85, %cst_49 {dimension_numbers = #tpu.dot_dimension_numbers<[1], [0], [0], [1], [0, 0, 1, 1], [], []>} : vector<32x32xf32>, vector<32x256xf32>, vector<32x256xf32> -> vector<32x256xf32>
    %c4_50 = arith.constant 4 : index
    %c0_51 = arith.constant 0 : index
    %c0_52 = arith.constant 0 : index
    %89 = vector.load %arg3[%c4_50, %c0_51, %c0_52] : memref<14x32x1xf32, #tpu.memory_space<vmem>>, vector<1x32x1xf32>
    %90 = vector.shape_cast %89 : vector<1x32x1xf32> to vector<32x1xf32>
    %91 = vector.broadcast %90 : vector<32x1xf32> to vector<32x256xf32>
    %92 = arith.addf %88, %91 : vector<32x256xf32>
    %cst_53 = arith.constant 0.000000e+00 : f32
    %93 = vector.broadcast %cst_53 : f32 to vector<32x256xf32>
    %94 = arith.maximumf %92, %93 : vector<32x256xf32>
    %c6 = arith.constant 6 : index
    %c0_54 = arith.constant 0 : index
    %c0_55 = arith.constant 0 : index
    %95 = vector.load %arg2[%c6, %c0_54, %c0_55] : memref<14x32x32xf32, #tpu.memory_space<vmem>>, vector<1x2x32xf32>
    %96 = vector.shape_cast %95 : vector<1x2x32xf32> to vector<2x32xf32>
    %cst_56 = arith.constant dense<0.000000e+00> : vector<2x256xf32>
    %97 = tpu.matmul %96, %94, %cst_56 {dimension_numbers = #tpu.dot_dimension_numbers<[1], [0], [0], [1], [0, 0, 1, 1], [], []>} : vector<2x32xf32>, vector<32x256xf32>, vector<2x256xf32> -> vector<2x256xf32>
    %c5_57 = arith.constant 5 : index
    %c0_58 = arith.constant 0 : index
    %c0_59 = arith.constant 0 : index
    %98 = vector.load %arg3[%c5_57, %c0_58, %c0_59] : memref<14x32x1xf32, #tpu.memory_space<vmem>>, vector<1x2x1xf32>
    %99 = vector.shape_cast %98 : vector<1x2x1xf32> to vector<2x1xf32>
    %100 = vector.broadcast %99 : vector<2x1xf32> to vector<2x256xf32>
    %101 = arith.addf %97, %100 : vector<2x256xf32>
    %cst_60 = arith.constant 0.000000e+00 : f32
    %102 = vector.broadcast %cst_60 : f32 to vector<2x256xf32>
    %103 = arith.maximumf %101, %102 : vector<2x256xf32>
    %cst_61 = arith.constant dense<0.000000e+00> : vector<2x64xf32>
    %104 = tpu.matmul %103, %43, %cst_61 {dimension_numbers = #tpu.dot_dimension_numbers<[1], [1], [0], [0], [0, 0, 1, 0], [], []>} : vector<2x256xf32>, vector<64x256xf32>, vector<2x64xf32> -> vector<2x64xf32>
    %cst_62 = arith.constant dense<0.000000e+00> : vector<2x512xf32>
    %105 = tpu.matmul %104, %34, %cst_62 {dimension_numbers = #tpu.dot_dimension_numbers<[1], [0], [0], [1], [0, 0, 1, 1], [], []>} : vector<2x64xf32>, vector<64x512xf32>, vector<2x512xf32> -> vector<2x512xf32>
    %106 = vector.extract_strided_slice %105 {offsets = [0, 0], sizes = [2, 256], strides = [1, 1]} : vector<2x512xf32> to vector<2x256xf32>
    %107 = vector.extract_strided_slice %105 {offsets = [0, 256], sizes = [2, 256], strides = [1, 1]} : vector<2x512xf32> to vector<2x256xf32>
    %c7 = arith.constant 7 : index
    %c0_63 = arith.constant 0 : index
    %c0_64 = arith.constant 0 : index
    %108 = vector.load %arg2[%c7, %c0_63, %c0_64] : memref<14x32x32xf32, #tpu.memory_space<vmem>>, vector<1x32x2xf32>
    %109 = vector.shape_cast %108 : vector<1x32x2xf32> to vector<32x2xf32>
    %cst_65 = arith.constant dense<0.000000e+00> : vector<32x256xf32>
    %110 = tpu.matmul %109, %106, %cst_65 {dimension_numbers = #tpu.dot_dimension_numbers<[1], [0], [0], [1], [0, 0, 1, 1], [], []>} : vector<32x2xf32>, vector<2x256xf32>, vector<32x256xf32> -> vector<32x256xf32>
    %c8 = arith.constant 8 : index
    %c0_66 = arith.constant 0 : index
    %c0_67 = arith.constant 0 : index
    %111 = vector.load %arg2[%c8, %c0_66, %c0_67] : memref<14x32x32xf32, #tpu.memory_space<vmem>>, vector<1x32x2xf32>
    %112 = vector.shape_cast %111 : vector<1x32x2xf32> to vector<32x2xf32>
    %113 = arith.subf %107, %106 : vector<2x256xf32>
    %cst_68 = arith.constant dense<0.000000e+00> : vector<32x256xf32>
    %114 = tpu.matmul %112, %113, %cst_68 {dimension_numbers = #tpu.dot_dimension_numbers<[1], [0], [0], [1], [0, 0, 1, 1], [], []>} : vector<32x2xf32>, vector<2x256xf32>, vector<32x256xf32> -> vector<32x256xf32>
    %115 = arith.addf %110, %114 : vector<32x256xf32>
    %c6_69 = arith.constant 6 : index
    %c0_70 = arith.constant 0 : index
    %c0_71 = arith.constant 0 : index
    %116 = vector.load %arg3[%c6_69, %c0_70, %c0_71] : memref<14x32x1xf32, #tpu.memory_space<vmem>>, vector<1x32x1xf32>
    %117 = vector.shape_cast %116 : vector<1x32x1xf32> to vector<32x1xf32>
    %118 = vector.broadcast %117 : vector<32x1xf32> to vector<32x256xf32>
    %119 = arith.addf %115, %118 : vector<32x256xf32>
    %cst_72 = arith.constant 0.000000e+00 : f32
    %120 = vector.broadcast %cst_72 : f32 to vector<32x256xf32>
    %121 = arith.maximumf %119, %120 : vector<32x256xf32>
    %c9 = arith.constant 9 : index
    %c0_73 = arith.constant 0 : index
    %c0_74 = arith.constant 0 : index
    %122 = vector.load %arg2[%c9, %c0_73, %c0_74] : memref<14x32x32xf32, #tpu.memory_space<vmem>>, vector<1x32x32xf32>
    %123 = vector.shape_cast %122 : vector<1x32x32xf32> to vector<32x32xf32>
    %cst_75 = arith.constant dense<0.000000e+00> : vector<32x256xf32>
    %124 = tpu.matmul %123, %121, %cst_75 {dimension_numbers = #tpu.dot_dimension_numbers<[1], [0], [0], [1], [0, 0, 1, 1], [], []>} : vector<32x32xf32>, vector<32x256xf32>, vector<32x256xf32> -> vector<32x256xf32>
    %c7_76 = arith.constant 7 : index
    %c0_77 = arith.constant 0 : index
    %c0_78 = arith.constant 0 : index
    %125 = vector.load %arg3[%c7_76, %c0_77, %c0_78] : memref<14x32x1xf32, #tpu.memory_space<vmem>>, vector<1x32x1xf32>
    %126 = vector.shape_cast %125 : vector<1x32x1xf32> to vector<32x1xf32>
    %127 = vector.broadcast %126 : vector<32x1xf32> to vector<32x256xf32>
    %128 = arith.addf %124, %127 : vector<32x256xf32>
    %cst_79 = arith.constant 0.000000e+00 : f32
    %129 = vector.broadcast %cst_79 : f32 to vector<32x256xf32>
    %130 = arith.maximumf %128, %129 : vector<32x256xf32>
    %c10 = arith.constant 10 : index
    %c0_80 = arith.constant 0 : index
    %c0_81 = arith.constant 0 : index
    %131 = vector.load %arg2[%c10, %c0_80, %c0_81] : memref<14x32x32xf32, #tpu.memory_space<vmem>>, vector<1x32x32xf32>
    %132 = vector.shape_cast %131 : vector<1x32x32xf32> to vector<32x32xf32>
    %cst_82 = arith.constant dense<0.000000e+00> : vector<32x256xf32>
    %133 = tpu.matmul %132, %130, %cst_82 {dimension_numbers = #tpu.dot_dimension_numbers<[1], [0], [0], [1], [0, 0, 1, 1], [], []>} : vector<32x32xf32>, vector<32x256xf32>, vector<32x256xf32> -> vector<32x256xf32>
    %c8_83 = arith.constant 8 : index
    %c0_84 = arith.constant 0 : index
    %c0_85 = arith.constant 0 : index
    %134 = vector.load %arg3[%c8_83, %c0_84, %c0_85] : memref<14x32x1xf32, #tpu.memory_space<vmem>>, vector<1x32x1xf32>
    %135 = vector.shape_cast %134 : vector<1x32x1xf32> to vector<32x1xf32>
    %136 = vector.broadcast %135 : vector<32x1xf32> to vector<32x256xf32>
    %137 = arith.addf %133, %136 : vector<32x256xf32>
    %cst_86 = arith.constant 0.000000e+00 : f32
    %138 = vector.broadcast %cst_86 : f32 to vector<32x256xf32>
    %139 = arith.maximumf %137, %138 : vector<32x256xf32>
    %cst_87 = arith.constant dense<0.000000e+00> : vector<32x64xf32>
    %140 = tpu.matmul %139, %43, %cst_87 {dimension_numbers = #tpu.dot_dimension_numbers<[1], [1], [0], [0], [0, 0, 1, 0], [], []>} : vector<32x256xf32>, vector<64x256xf32>, vector<32x64xf32> -> vector<32x64xf32>
    %c11 = arith.constant 11 : index
    %c0_88 = arith.constant 0 : index
    %c0_89 = arith.constant 0 : index
    %141 = vector.load %arg2[%c11, %c0_88, %c0_89] : memref<14x32x32xf32, #tpu.memory_space<vmem>>, vector<1x32x32xf32>
    %142 = vector.shape_cast %141 : vector<1x32x32xf32> to vector<32x32xf32>
    %cst_90 = arith.constant dense<0.000000e+00> : vector<32x64xf32>
    %143 = tpu.matmul %142, %140, %cst_90 {dimension_numbers = #tpu.dot_dimension_numbers<[1], [0], [0], [1], [0, 0, 1, 1], [], []>} : vector<32x32xf32>, vector<32x64xf32>, vector<32x64xf32> -> vector<32x64xf32>
    %c9_91 = arith.constant 9 : index
    %c0_92 = arith.constant 0 : index
    %c0_93 = arith.constant 0 : index
    %144 = vector.load %arg3[%c9_91, %c0_92, %c0_93] : memref<14x32x1xf32, #tpu.memory_space<vmem>>, vector<1x32x1xf32>
    %145 = vector.shape_cast %144 : vector<1x32x1xf32> to vector<32x1xf32>
    %146 = vector.broadcast %145 : vector<32x1xf32> to vector<32x64xf32>
    %147 = arith.addf %143, %146 : vector<32x64xf32>
    %cst_94 = arith.constant 0.000000e+00 : f32
    %148 = vector.broadcast %cst_94 : f32 to vector<32x64xf32>
    %149 = arith.maximumf %147, %148 : vector<32x64xf32>
    %c12_95 = arith.constant 12 : index
    %c0_96 = arith.constant 0 : index
    %c0_97 = arith.constant 0 : index
    %150 = vector.load %arg2[%c12_95, %c0_96, %c0_97] : memref<14x32x32xf32, #tpu.memory_space<vmem>>, vector<1x32x32xf32>
    %151 = vector.shape_cast %150 : vector<1x32x32xf32> to vector<32x32xf32>
    %cst_98 = arith.constant dense<0.000000e+00> : vector<32x64xf32>
    %152 = tpu.matmul %151, %149, %cst_98 {dimension_numbers = #tpu.dot_dimension_numbers<[1], [0], [0], [1], [0, 0, 1, 1], [], []>} : vector<32x32xf32>, vector<32x64xf32>, vector<32x64xf32> -> vector<32x64xf32>
    %c10_99 = arith.constant 10 : index
    %c0_100 = arith.constant 0 : index
    %c0_101 = arith.constant 0 : index
    %153 = vector.load %arg3[%c10_99, %c0_100, %c0_101] : memref<14x32x1xf32, #tpu.memory_space<vmem>>, vector<1x32x1xf32>
    %154 = vector.shape_cast %153 : vector<1x32x1xf32> to vector<32x1xf32>
    %155 = vector.broadcast %154 : vector<32x1xf32> to vector<32x64xf32>
    %156 = arith.addf %152, %155 : vector<32x64xf32>
    %cst_102 = arith.constant 0.000000e+00 : f32
    %157 = vector.broadcast %cst_102 : f32 to vector<32x64xf32>
    %158 = arith.maximumf %156, %157 : vector<32x64xf32>
    %c13_103 = arith.constant 13 : index
    %c0_104 = arith.constant 0 : index
    %c0_105 = arith.constant 0 : index
    %159 = vector.load %arg2[%c13_103, %c0_104, %c0_105] : memref<14x32x32xf32, #tpu.memory_space<vmem>>, vector<1x4x32xf32>
    %160 = vector.shape_cast %159 : vector<1x4x32xf32> to vector<4x32xf32>
    %cst_106 = arith.constant dense<0.000000e+00> : vector<4x64xf32>
    %161 = tpu.matmul %160, %158, %cst_106 {dimension_numbers = #tpu.dot_dimension_numbers<[1], [0], [0], [1], [0, 0, 1, 1], [], []>} : vector<4x32xf32>, vector<32x64xf32>, vector<4x64xf32> -> vector<4x64xf32>
    %c11_107 = arith.constant 11 : index
    %c0_108 = arith.constant 0 : index
    %c0_109 = arith.constant 0 : index
    %162 = vector.load %arg3[%c11_107, %c0_108, %c0_109] : memref<14x32x1xf32, #tpu.memory_space<vmem>>, vector<1x4x1xf32>
    %163 = vector.shape_cast %162 : vector<1x4x1xf32> to vector<4x1xf32>
    %164 = vector.broadcast %163 : vector<4x1xf32> to vector<4x64xf32>
    %165 = arith.addf %161, %164 : vector<4x64xf32>
    %c0_110 = arith.constant 0 : index
    %c0_111 = arith.constant 0 : index
    %166 = vector.load %arg4[%c0_110, %c0_111] : memref<4x64xf32, #tpu.memory_space<vmem>>, vector<4x64xf32>
    tpu.vector_store %arg4[%c0_110, %c0_111], %165 {strides = array<i32>} : memref<4x64xf32, #tpu.memory_space<vmem>>, vector<4x64xf32>,
    return
  }
}

</mosaic_0001>

<llo_original>
// kernel: edgenet_embed_forward.1
$region0: #{edgenet_embed_forward.1}
  #allocation0 [shape = 'u32[]', space=smem, size = 0x4, offset = 0x4, fixed_abs, tag = 'smem constant byte address 0x4 - core index']
  #allocation1 [shape = 'u32[144,128]{1,0:T(1,128)}', space=vmem, size = 0x12000, scoped, tag = 'internal scratch']
  %s0 = inlined_call_operand.vmem [shape: f32[4,64], index: 0, kind: input, shape index: {}]
  %s1 = inlined_call_operand.vmem [shape: s32[1,512], index: 1, kind: input, shape index: {}]
  %s2 = inlined_call_operand.vmem [shape: f32[14,32,32], index: 2, kind: input, shape index: {}]
  %s3 = inlined_call_operand.vmem [shape: f32[14,32,1], index: 3, kind: input, shape index: {}]
  %s4 = inlined_call_operand.hbm [shape: f32[4,64], index: 4, kind: output, shape index: {}]
  %s5 = sld [smem:[#allocation0]]
  $region26: #{edgenet_embed_forward.1} parent=0
    _
  %s7 = ssub.s32 1, %s5
  %s8 = scalar_select 0, %s7, %s5
  $region1: #{edgenet_embed_forward.1} parent=0
    #allocation2 [shape = 'u8[2048]{0}', space=vmem, size = 0x800, scoped, tag = 'output window, operand 0, single buffered']
    #allocation3 [shape = 's32[1]{0}', space=sflag, size = 0x4, scoped, tag = 'scoped memory for edgenet_embed_forward.1']
    %9 = vsyncpa [#allocation3], 0
    // Predicated region
    $region2: #{edgenet_embed_forward.1} parent=1 // pred_check
      _
    $region3: #{edgenet_embed_forward.1} parent=1 // pred_check_branch
      %11 = sbr.rel (0) target = $region5
    $region4: #{edgenet_embed_forward.1} parent=1 // pred_region
      _
    $region5: #{edgenet_embed_forward.1} parent=1 // pred_fallthru
      _
    // Predicated region
    $region6: #{edgenet_embed_forward.1} parent=1 // pred_check
      _
    $region7: #{edgenet_embed_forward.1} parent=1 // pred_check_branch
      %13 = sbr.rel (0) target = $region9
    $region8: #{edgenet_embed_forward.1} parent=1 // pred_region
      _
    $region9: #{edgenet_embed_forward.1} parent=1 // pred_fallthru
      _
    // Predicated region
    $region10: #{edgenet_embed_forward.1} parent=1 // pred_check
      _
    $region11: #{edgenet_embed_forward.1} parent=1 // pred_check_branch
      %15 = sbr.rel (0) target = $region13
    $region12: #{edgenet_embed_forward.1} parent=1 // pred_region
      _
    $region13: #{edgenet_embed_forward.1} parent=1 // pred_fallthru
      _
    // Predicated region
    $region14: #{edgenet_embed_forward.1} parent=1 // pred_check
      _
    $region15: #{edgenet_embed_forward.1} parent=1 // pred_check_branch
      %17 = sbr.rel (0) target = $region17
    $region16: #{edgenet_embed_forward.1} parent=1 // pred_region
      _
    $region17: #{edgenet_embed_forward.1} parent=1 // pred_fallthru
      _
    %v18 = vld [vmem:[%s0] sm:$0xf]
    %vm19 = vcmask 519168
    %v20 = vsel %vm19, %v18, 0.0
    %21 = vadd.xlane.f32.xlu0 %v20
    %v22 = vpop.xlane.xlu0 %21
    %v23 = vrcp.pop 64.0
    %v24 = vmul.f32 %v22, %v23
    %v25 = vsub.f32 %v18, %v24
    %v26 = vmul.f32 %v25, %v25
    %v27 = vsel %vm19, %v26, 0.0
    %28 = vadd.xlane.f32.xlu0 %v27
    %v29 = vpop.xlane.xlu0 %28
    %v30 = vmul.f32 %v29, %v23
    %v31 = vadd.f32 %v30, 1e-05
    %v32 = vrsqrt.pop %v31
    %v33 = vmul.f32 %v31, %v32
    %vm34 = vcmp.eq.f32.partialorder %v31, inf
    %v35 = vsel %vm34, %v31, %v33
    %vm36 = vcmp.eq.f32.partialorder %v31, 0.0
    %v37 = vand.u32 %v31, 2147483648
    %v38 = vsel %vm36, %v37, %v35
    %v39 = vrcp.pop %v38
    %v40 = vmul.f32 %v25, %v39
    %s41 = scalar_lea.vmem %s3, 384
    %v42 = vld [vmem:[%s41] sm:$0xf]
    %44 = vset.pattern.permute.xlu0 0
    %45 = vperm.xlu0 %44, %v42
    %v46 = vpop.permute.xlu0 %45
    %v48 = vmul.f32 %v40, %v46
    %s49 = scalar_lea.vmem %s3, 416
    %v50 = vld [vmem:[%s49] sm:$0xf]
    %52 = vset.pattern.permute.xlu0 0
    %53 = vperm.xlu0 %52, %v50
    %v54 = vpop.permute.xlu0 %53
    %v56 = vadd.f32 %v48, %v54
    %v57 = vlaneseq
    %v58 = vshrl.u32 %v57, 7
    %v59 = vadd.s32 %v58, 8
    %v60 = vadd.s32 %v58, 16
    %v61 = vadd.s32 %v58, 24
    %v62 = vadd.s32 %v58, 32
    %v63 = vadd.s32 %v58, 40
    %v64 = vadd.s32 %v58, 48
    %v65 = vadd.s32 %v58, 56
    %v66 = vld [vmem:[%s1] sm:$0xf]
    %v67 = vlaneseq
    %v68 = vshrl.u32 %v67, 7
    %v69 = vsub.s32 0, %v68
    %v70 = vrot.slane %v66, %v69
    %v71 = vlaneseq
    %v72 = vshrl.u32 %v71, 7
    %v73 = vsub.s32 1, %v72
    %v74 = vrot.slane %v66, %v73
    %v75 = vlaneseq
    %v76 = vshrl.u32 %v75, 7
    %v77 = vsub.s32 2, %v76
    %v78 = vrot.slane %v66, %v77
    %v79 = vlaneseq
    %v80 = vshrl.u32 %v79, 7
    %v81 = vsub.s32 3, %v80
    %v82 = vrot.slane %v66, %v81
    %vm83 = vcmp.eq.s32.totalorder %v70, %v58
    %vm84 = vcmp.eq.s32.totalorder %v74, %v58
    %vm85 = vcmp.eq.s32.totalorder %v78, %v58
    %vm86 = vcmp.eq.s32.totalorder %v82, %v58
    %vm87 = vcmp.eq.s32.totalorder %v70, %v59
    %vm88 = vcmp.eq.s32.totalorder %v74, %v59
    %vm89 = vcmp.eq.s32.totalorder %v78, %v59
    %vm90 = vcmp.eq.s32.totalorder %v82, %v59
    %vm91 = vcmp.eq.s32.totalorder %v70, %v60
    %vm92 = vcmp.eq.s32.totalorder %v74, %v60
    %vm93 = vcmp.eq.s32.totalorder %v78, %v60
    %vm94 = vcmp.eq.s32.totalorder %v82, %v60
    %vm95 = vcmp.eq.s32.totalorder %v70, %v61
    %vm96 = vcmp.eq.s32.totalorder %v74, %v61
    %vm97 = vcmp.eq.s32.totalorder %v78, %v61
    %vm98 = vcmp.eq.s32.totalorder %v82, %v61
    %vm99 = vcmp.eq.s32.totalorder %v70, %v62
    %vm100 = vcmp.eq.s32.totalorder %v74, %v62
    %vm101 = vcmp.eq.s32.totalorder %v78, %v62
    %vm102 = vcmp.eq.s32.totalorder %v82, %v62
    %vm103 = vcmp.eq.s32.totalorder %v70, %v63
    %vm104 = vcmp.eq.s32.totalorder %v74, %v63
    %vm105 = vcmp.eq.s32.totalorder %v78, %v63
    %vm106 = vcmp.eq.s32.totalorder %v82, %v63
    %vm107 = vcmp.eq.s32.totalorder %v70, %v64
    %vm108 = vcmp.eq.s32.totalorder %v74, %v64
    %vm109 = vcmp.eq.s32.totalorder %v78, %v64
    %vm110 = vcmp.eq.s32.totalorder %v82, %v64
    %vm111 = vcmp.eq.s32.totalorder %v70, %v65
    %vm112 = vcmp.eq.s32.totalorder %v74, %v65
    %vm113 = vcmp.eq.s32.totalorder %v78, %v65
    %vm114 = vcmp.eq.s32.totalorder %v82, %v65
    %v115 = vsel %vm83, 1, 0
    %v116 = vsel %vm84, 1, 0
    %v117 = vsel %vm85, 1, 0
    %v118 = vsel %vm86, 1, 0
    %v119 = vsel %vm87, 1, 0
    %v120 = vsel %vm88, 1, 0
    %v121 = vsel %vm89, 1, 0
    %v122 = vsel %vm90, 1, 0
    %v123 = vsel %vm91, 1, 0
    %v124 = vsel %vm92, 1, 0
    %v125 = vsel %vm93, 1, 0
    %v126 = vsel %vm94, 1, 0
    %v127 = vsel %vm95, 1, 0
    %v128 = vsel %vm96, 1, 0
    %v129 = vsel %vm97, 1, 0
    %v130 = vsel %vm98, 1, 0
    %v131 = vsel %vm99, 1, 0
    %v132 = vsel %vm100, 1, 0
    %v133 = vsel %vm101, 1, 0
    %v134 = vsel %vm102, 1, 0
    %v135 = vsel %vm103, 1, 0
    %v136 = vsel %vm104, 1, 0
    %v137 = vsel %vm105, 1, 0
    %v138 = vsel %vm106, 1, 0
    %v139 = vsel %vm107, 1, 0
    %v140 = vsel %vm108, 1, 0
    %v141 = vsel %vm109, 1, 0
    %v142 = vsel %vm110, 1, 0
    %v143 = vsel %vm111, 1, 0
    %v144 = vsel %vm112, 1, 0
    %v145 = vsel %vm113, 1, 0
    %v146 = vsel %vm114, 1, 0
    %v147 = vcvt.s32.f32 %v115
    %v148 = vcvt.s32.f32 %v116
    %v149 = vcvt.s32.f32 %v117
    %v150 = vcvt.s32.f32 %v118
    %v151 = vcvt.s32.f32 %v119
    %v152 = vcvt.s32.f32 %v120
    %v153 = vcvt.s32.f32 %v121
    %v154 = vcvt.s32.f32 %v122
    %v155 = vcvt.s32.f32 %v123
    %v156 = vcvt.s32.f32 %v124
    %v157 = vcvt.s32.f32 %v125
    %v158 = vcvt.s32.f32 %v126
    %v159 = vcvt.s32.f32 %v127
    %v160 = vcvt.s32.f32 %v128
    %v161 = vcvt.s32.f32 %v129
    %v162 = vcvt.s32.f32 %v130
    %v163 = vcvt.s32.f32 %v131
    %v164 = vcvt.s32.f32 %v132
    %v165 = vcvt.s32.f32 %v133
    %v166 = vcvt.s32.f32 %v134
    %v167 = vcvt.s32.f32 %v135
    %v168 = vcvt.s32.f32 %v136
    %v169 = vcvt.s32.f32 %v137
    %v170 = vcvt.s32.f32 %v138
    %v171 = vcvt.s32.f32 %v139
    %v172 = vcvt.s32.f32 %v140
    %v173 = vcvt.s32.f32 %v141
    %v174 = vcvt.s32.f32 %v142
    %v175 = vcvt.s32.f32 %v143
    %v176 = vcvt.s32.f32 %v144
    %v177 = vcvt.s32.f32 %v145
    %v178 = vcvt.s32.f32 %v146
    %v179 = vadd.f32 %v147, %v148
    %180 = vadd.xlane.f32.xlu0 %v179
    %v181 = vpop.xlane.xlu0 %180
    %v182 = vadd.f32 %v151, %v152
    %183 = vadd.xlane.f32.xlu0 %v182
    %v184 = vpop.xlane.xlu0 %183
    %v185 = vadd.f32 %v155, %v156
    %186 = vadd.xlane.f32.xlu0 %v185
    %v187 = vpop.xlane.xlu0 %186
    %v188 = vadd.f32 %v159, %v160
    %189 = vadd.xlane.f32.xlu0 %v188
    %v190 = vpop.xlane.xlu0 %189
    %v191 = vadd.f32 %v163, %v164
    %192 = vadd.xlane.f32.xlu0 %v191
    %v193 = vpop.xlane.xlu0 %192
    %v194 = vadd.f32 %v167, %v168
    %195 = vadd.xlane.f32.xlu0 %v194
    %v196 = vpop.xlane.xlu0 %195
    %v197 = vadd.f32 %v171, %v172
    %198 = vadd.xlane.f32.xlu0 %v197
    %v199 = vpop.xlane.xlu0 %198
    %v200 = vadd.f32 %v175, %v176
    %201 = vadd.xlane.f32.xlu0 %v200
    %v202 = vpop.xlane.xlu0 %201
    %v203 = vmax.f32 %v181, 1.0
    %v204 = vmax.f32 %v184, 1.0
    %v205 = vmax.f32 %v187, 1.0
    %v206 = vmax.f32 %v190, 1.0
    %v207 = vmax.f32 %v193, 1.0
    %v208 = vmax.f32 %v196, 1.0
    %v209 = vmax.f32 %v199, 1.0
    %v210 = vmax.f32 %v202, 1.0
    %v211 = vrcp.pop %v203
    %v212 = vrcp.pop %v204
    %v213 = vrcp.pop %v205
    %v214 = vrcp.pop %v206
    %v215 = vrcp.pop %v207
    %v216 = vrcp.pop %v208
    %v217 = vrcp.pop %v209
    %v218 = vrcp.pop %v210
    %v219 = vmul.f32 %v147, %v211
    %v220 = vmul.f32 %v148, %v211
    %v221 = vmul.f32 %v151, %v212
    %v222 = vmul.f32 %v152, %v212
    %v223 = vmul.f32 %v155, %v213
    %v224 = vmul.f32 %v156, %v213
    %v225 = vmul.f32 %v159, %v214
    %v226 = vmul.f32 %v160, %v214
    %v227 = vmul.f32 %v163, %v215
    %v228 = vmul.f32 %v164, %v215
    %v229 = vmul.f32 %v167, %v216
    %v230 = vmul.f32 %v168, %v216
    %v231 = vmul.f32 %v171, %v217
    %v232 = vmul.f32 %v172, %v217
    %v233 = vmul.f32 %v175, %v218
    %v234 = vmul.f32 %v176, %v218
    %v235 = vld [vmem:[%s2] sm:$0xff]
    %v236 = vld [vmem:[%s2 + $0x8] sm:$0xff]
    %v237 = vld [vmem:[%s2 + $0x10] sm:$0xff]
    %v238 = vld [vmem:[%s2 + $0x18] sm:$0xff]
    %v239 = vld [vmem:[%s3] sm:$0xff]
    %v240 = vld [vmem:[%s3 + $0x8] sm:$0xff]
    %v241 = vld [vmem:[%s3 + $0x10] sm:$0xff]
    %v242 = vld [vmem:[%s3 + $0x18] sm:$0xff]
    %244 = vset.pattern.permute.xlu0 0
    %245 = vperm.xlu0 %244, %v239
    %v246 = vpop.permute.xlu0 %245
    %249 = vset.pattern.permute.xlu0 0
    %250 = vperm.xlu0 %249, %v240
    %v251 = vpop.permute.xlu0 %250
    %254 = vset.pattern.permute.xlu0 0
    %255 = vperm.xlu0 %254, %v241
    %v256 = vpop.permute.xlu0 %255
    %259 = vset.pattern.permute.xlu0 0
    %260 = vperm.xlu0 %259, %v242
    %v261 = vpop.permute.xlu0 %260
    %vm263 = vcmask 31744
    %v265 = vsel %vm263, %v235, 0
    %v268 = vsel %vm263, %v236, 0
    %v271 = vsel %vm263, %v237, 0
    %v274 = vsel %vm263, %v238, 0
    %vm276 = vcmask 1043456
    %v278 = vsel %vm276, %v56, 0
    %280 = vmatprep.subr.mxu0 0.0
    %281 = vmatpush1.msra.mxu0 0.0
    %282 = vmatprep.subr.mxu0 0.0
    %283 = vmatpush1.msra.mxu0 0.0
    %284 = vmatprep.subr.mxu0 0.0
    %285 = vmatpush1.msra.mxu0 0.0
    %286 = vmatprep.subr.mxu0 0.0
    %287 = vmatpush1.msra.mxu0 0.0
    %288 = vmatprep.subr.mxu0 0.0
    %289 = vmatpush1.msra.mxu0 0.0
    %290 = vmatprep.subr.mxu0 0.0
    %291 = vmatpush1.msra.mxu0 0.0
    %292 = vmatprep.subr.mxu0 0.0
    %293 = vmatpush1.msra.mxu0 0.0
    %294 = vmatprep.subr.mxu0 0.0
    %295 = vmatpush1.msra.mxu0 0.0
    %296 = vmatprep.subr.mxu0 0.0
    %297 = vmatpush1.msra.mxu0 0.0
    %298 = vmatprep.subr.mxu0 0.0
    %299 = vmatpush1.msra.mxu0 0.0
    %300 = vmatprep.subr.mxu0 0.0
    %301 = vmatpush1.msra.mxu0 0.0
    %302 = vmatprep.subr.mxu0 0.0
    %303 = vmatpush1.msra.mxu0 0.0
    %304 = vmatprep.subr.mxu0 0.0
    %305 = vmatpush1.msra.mxu0 0.0
    %306 = vmatprep.subr.mxu0 0.0
    %307 = vmatpush1.msra.mxu0 0.0
    %308 = vmatprep.subr.mxu0 0.0
    %309 = vmatpush1.msra.mxu0 0.0
    %310 = vmatprep.subr.mxu0 0.0
    %311 = vmatpush1.msra.mxu0 %v278
    %312 = vmatprep.subr.mxu0 0.0
    %313 = vmatpush2.msra.mxu0 0.0
    %314 = vmatprep.subr.mxu0 0.0
    %315 = vmatpush2.msra.mxu0 0.0
    %316 = vmatprep.subr.mxu0 0.0
    %317 = vmatpush2.msra.mxu0 0.0
    %318 = vmatprep.subr.mxu0 0.0
    %319 = vmatpush2.msra.mxu0 0.0
    %320 = vmatprep.subr.mxu0 0.0
    %321 = vmatpush2.msra.mxu0 0.0
    %322 = vmatprep.subr.mxu0 0.0
    %323 = vmatpush2.msra.mxu0 0.0
    %324 = vmatprep.subr.mxu0 0.0
    %325 = vmatpush2.msra.mxu0 0.0
    %326 = vmatprep.subr.mxu0 0.0
    %327 = vmatpush2.msra.mxu0 0.0
    %328 = vmatprep.subr.mxu0 0.0
    %329 = vmatpush2.msra.mxu0 0.0
    %330 = vmatprep.subr.mxu0 0.0
    %331 = vmatpush2.msra.mxu0 0.0
    %332 = vmatprep.subr.mxu0 0.0
    %333 = vmatpush2.msra.mxu0 0.0
    %334 = vmatprep.subr.mxu0 0.0
    %335 = vmatpush2.msra.mxu0 0.0
    %336 = vmatprep.subr.mxu0 0.0
    %337 = vmatpush2.msra.mxu0 0.0
    %338 = vmatprep.subr.mxu0 0.0
    %339 = vmatpush2.msra.mxu0 0.0
    %340 = vmatprep.subr.mxu0 0.0
    %341 = vmatpush2.msra.mxu0 0.0
    %342 = vmatprep.subr.mxu0 0.0
    %343 = vmatpush2.msra.mxu0 0.0
    %344 = vmatprep.mubr.f32.mxu0 0.0
    %345 = vmatmul.mubr.f32.gmra.mxu0 %v265
    %v346 = vpop.f32.mrf.mxu0
    %v347 = vadd.f32 %v246, %v346
    %v348 = vpop.f32.mrf.mxu0
    %349 = vmatprep.mubr.f32.mxu0 0.0
    %350 = vmatmul.mubr.f32.gmra.mxu0 %v268
    %v351 = vpop.f32.mrf.mxu0
    %v352 = vadd.f32 %v251, %v351
    %v353 = vpop.f32.mrf.mxu0
    %354 = vmatprep.mubr.f32.mxu0 0.0
    %355 = vmatmul.mubr.f32.gmra.mxu0 %v271
    %v356 = vpop.f32.mrf.mxu0
    %v357 = vadd.f32 %v256, %v356
    %v358 = vpop.f32.mrf.mxu0
    %359 = vmatprep.mubr.f32.mxu0 0.0
    %360 = vmatmul.mubr.f32.gmra.mxu0 %v274
    %v361 = vpop.f32.mrf.mxu0
    %v362 = vadd.f32 %v261, %v361
    %v363 = vpop.f32.mrf.mxu0
    %364 = vdwg.mxu0
    %v365 = vmax.f32 %v347, 0.0
    %v366 = vmax.f32 %v352, 0.0
    %v367 = vmax.f32 %v357, 0.0
    %v368 = vmax.f32 %v362, 0.0
    %s369 = scalar_lea.vmem %s2, 32
    %v370 = vld [vmem:[%s369] sm:$0xff]
    %v371 = vld [vmem:[%s369 + $0x8] sm:$0xff]
    %v372 = vld [vmem:[%s369 + $0x10] sm:$0xff]
    %v373 = vld [vmem:[%s369 + $0x18] sm:$0xff]
    %s374 = scalar_lea.vmem %s3, 32
    %v375 = vld [vmem:[%s374] sm:$0xff]
    %v376 = vld [vmem:[%s374 + $0x8] sm:$0xff]
    %v377 = vld [vmem:[%s374 + $0x10] sm:$0xff]
    %v378 = vld [vmem:[%s374 + $0x18] sm:$0xff]
    %380 = vset.pattern.permute.xlu0 0
    %381 = vperm.xlu0 %380, %v375
    %v382 = vpop.permute.xlu0 %381
    %385 = vset.pattern.permute.xlu0 0
    %386 = vperm.xlu0 %385, %v376
    %v387 = vpop.permute.xlu0 %386
    %390 = vset.pattern.permute.xlu0 0
    %391 = vperm.xlu0 %390, %v377
    %v392 = vpop.permute.xlu0 %391
    %395 = vset.pattern.permute.xlu0 0
    %396 = vperm.xlu0 %395, %v378
    %v397 = vpop.permute.xlu0 %396
    %vm399 = vcmask 261120
    %v401 = vsel %vm399, %v370, 0
    %v404 = vsel %vm399, %v371, 0
    %v407 = vsel %vm399, %v372, 0
    %v410 = vsel %vm399, %v373, 0
    %412 = vmatprep.subr.mxu0 0.0
    %413 = vmatpush1.msra.mxu0 0.0
    %414 = vmatprep.subr.mxu0 0.0
    %415 = vmatpush1.msra.mxu0 0.0
    %416 = vmatprep.subr.mxu0 0.0
    %417 = vmatpush1.msra.mxu0 0.0
    %418 = vmatprep.subr.mxu0 0.0
    %419 = vmatpush1.msra.mxu0 0.0
    %420 = vmatprep.subr.mxu0 0.0
    %421 = vmatpush1.msra.mxu0 0.0
    %422 = vmatprep.subr.mxu0 0.0
    %423 = vmatpush1.msra.mxu0 0.0
    %424 = vmatprep.subr.mxu0 0.0
    %425 = vmatpush1.msra.mxu0 0.0
    %426 = vmatprep.subr.mxu0 0.0
    %427 = vmatpush1.msra.mxu0 0.0
    %428 = vmatprep.subr.mxu0 0.0
    %429 = vmatpush1.msra.mxu0 0.0
    %430 = vmatprep.subr.mxu0 0.0
    %431 = vmatpush1.msra.mxu0 0.0
    %432 = vmatprep.subr.mxu0 0.0
    %433 = vmatpush1.msra.mxu0 0.0
    %434 = vmatprep.subr.mxu0 0.0
    %435 = vmatpush1.msra.mxu0 0.0
    %436 = vmatprep.subr.mxu0 0.0
    %437 = vmatpush1.msra.mxu0 %v368
    %438 = vmatprep.subr.mxu0 0.0
    %439 = vmatpush1.msra.mxu0 %v367
    %440 = vmatprep.subr.mxu0 0.0
    %441 = vmatpush1.msra.mxu0 %v366
    %442 = vmatprep.subr.mxu0 0.0
    %443 = vmatpush1.msra.mxu0 %v365
    %444 = vmatprep.subr.mxu0 0.0
    %445 = vmatpush2.msra.mxu0 0.0
    %446 = vmatprep.subr.mxu0 0.0
    %447 = vmatpush2.msra.mxu0 0.0
    %448 = vmatprep.subr.mxu0 0.0
    %449 = vmatpush2.msra.mxu0 0.0
    %450 = vmatprep.subr.mxu0 0.0
    %451 = vmatpush2.msra.mxu0 0.0
    %452 = vmatprep.subr.mxu0 0.0
    %453 = vmatpush2.msra.mxu0 0.0
    %454 = vmatprep.subr.mxu0 0.0
    %455 = vmatpush2.msra.mxu0 0.0
    %456 = vmatprep.subr.mxu0 0.0
    %457 = vmatpush2.msra.mxu0 0.0
    %458 = vmatprep.subr.mxu0 0.0
    %459 = vmatpush2.msra.mxu0 0.0
    %460 = vmatprep.subr.mxu0 0.0
    %461 = vmatpush2.msra.mxu0 0.0
    %462 = vmatprep.subr.mxu0 0.0
    %463 = vmatpush2.msra.mxu0 0.0
    %464 = vmatprep.subr.mxu0 0.0
    %465 = vmatpush2.msra.mxu0 0.0
    %466 = vmatprep.subr.mxu0 0.0
    %467 = vmatpush2.msra.mxu0 0.0
    %468 = vmatprep.subr.mxu0 0.0
    %469 = vmatpush2.msra.mxu0 0.0
    %470 = vmatprep.subr.mxu0 0.0
    %471 = vmatpush2.msra.mxu0 0.0
    %472 = vmatprep.subr.mxu0 0.0
    %473 = vmatpush2.msra.mxu0 0.0
    %474 = vmatprep.subr.mxu0 0.0
    %475 = vmatpush2.msra.mxu0 0.0
    %476 = vmatprep.mubr.f32.mxu0 0.0
    %477 = vmatmul.mubr.f32.gmra.mxu0 %v401
    %v478 = vpop.f32.mrf.mxu0
    %v479 = vadd.f32 %v382, %v478
    %v480 = vpop.f32.mrf.mxu0
    %481 = vmatprep.mubr.f32.mxu0 0.0
    %482 = vmatmul.mubr.f32.gmra.mxu0 %v404
    %v483 = vpop.f32.mrf.mxu0
    %v484 = vadd.f32 %v387, %v483
    %v485 = vpop.f32.mrf.mxu0
    %486 = vmatprep.mubr.f32.mxu0 0.0
    %487 = vmatmul.mubr.f32.gmra.mxu0 %v407
    %v488 = vpop.f32.mrf.mxu0
    %v489 = vadd.f32 %v392, %v488
    %v490 = vpop.f32.mrf.mxu0
    %491 = vmatprep.mubr.f32.mxu0 0.0
    %492 = vmatmul.mubr.f32.gmra.mxu0 %v410
    %v493 = vpop.f32.mrf.mxu0
    %v494 = vadd.f32 %v397, %v493
    %v495 = vpop.f32.mrf.mxu0
    %496 = vdwg.mxu0
    %v497 = vmax.f32 %v479, 0.0
    %v498 = vmax.f32 %v484, 0.0
    %v499 = vmax.f32 %v489, 0.0
    %v500 = vmax.f32 %v494, 0.0
    %s501 = scalar_lea.vmem %s2, 64
    %v502 = vld [vmem:[%s501] sm:$0xff]
    %v503 = vld [vmem:[%s501 + $0x8] sm:$0xff]
    %v504 = vld [vmem:[%s501 + $0x10] sm:$0xff]
    %v505 = vld [vmem:[%s501 + $0x18] sm:$0xff]
    %s506 = scalar_lea.vmem %s3, 64
    %v507 = vld [vmem:[%s506] sm:$0xff]
    %v508 = vld [vmem:[%s506 + $0x8] sm:$0xff]
    %v509 = vld [vmem:[%s506 + $0x10] sm:$0xff]
    %v510 = vld [vmem:[%s506 + $0x18] sm:$0xff]
    %512 = vset.pattern.permute.xlu0 0
    %513 = vperm.xlu0 %512, %v507
    %v514 = vpop.permute.xlu0 %513
    %517 = vset.pattern.permute.xlu0 0
    %518 = vperm.xlu0 %517, %v508
    %v519 = vpop.permute.xlu0 %518
    %522 = vset.pattern.permute.xlu0 0
    %523 = vperm.xlu0 %522, %v509
    %v524 = vpop.permute.xlu0 %523
    %527 = vset.pattern.permute.xlu0 0
    %528 = vperm.xlu0 %527, %v510
    %v529 = vpop.permute.xlu0 %528
    %v532 = vsel %vm399, %v502, 0
    %v535 = vsel %vm399, %v503, 0
    %v538 = vsel %vm399, %v504, 0
    %v541 = vsel %vm399, %v505, 0
    %543 = vmatprep.subr.mxu0 0.0
    %544 = vmatpush1.msra.mxu0 0.0
    %545 = vmatprep.subr.mxu0 0.0
    %546 = vmatpush1.msra.mxu0 0.0
    %547 = vmatprep.subr.mxu0 0.0
    %548 = vmatpush1.msra.mxu0 0.0
    %549 = vmatprep.subr.mxu0 0.0
    %550 = vmatpush1.msra.mxu0 0.0
    %551 = vmatprep.subr.mxu0 0.0
    %552 = vmatpush1.msra.mxu0 0.0
    %553 = vmatprep.subr.mxu0 0.0
    %554 = vmatpush1.msra.mxu0 0.0
    %555 = vmatprep.subr.mxu0 0.0
    %556 = vmatpush1.msra.mxu0 0.0
    %557 = vmatprep.subr.mxu0 0.0
    %558 = vmatpush1.msra.mxu0 0.0
    %559 = vmatprep.subr.mxu0 0.0
    %560 = vmatpush1.msra.mxu0 0.0
    %561 = vmatprep.subr.mxu0 0.0
    %562 = vmatpush1.msra.mxu0 0.0
    %563 = vmatprep.subr.mxu0 0.0
    %564 = vmatpush1.msra.mxu0 0.0
    %565 = vmatprep.subr.mxu0 0.0
    %566 = vmatpush1.msra.mxu0 0.0
    %567 = vmatprep.subr.mxu0 0.0
    %568 = vmatpush1.msra.mxu0 %v500
    %569 = vmatprep.subr.mxu0 0.0
    %570 = vmatpush1.msra.mxu0 %v499
    %571 = vmatprep.subr.mxu0 0.0
    %572 = vmatpush1.msra.mxu0 %v498
    %573 = vmatprep.subr.mxu0 0.0
    %574 = vmatpush1.msra.mxu0 %v497
    %575 = vmatprep.subr.mxu0 0.0
    %576 = vmatpush2.msra.mxu0 0.0
    %577 = vmatprep.subr.mxu0 0.0
    %578 = vmatpush2.msra.mxu0 0.0
    %579 = vmatprep.subr.mxu0 0.0
    %580 = vmatpush2.msra.mxu0 0.0
    %581 = vmatprep.subr.mxu0 0.0
    %582 = vmatpush2.msra.mxu0 0.0
    %583 = vmatprep.subr.mxu0 0.0
    %584 = vmatpush2.msra.mxu0 0.0
    %585 = vmatprep.subr.mxu0 0.0
    %586 = vmatpush2.msra.mxu0 0.0
    %587 = vmatprep.subr.mxu0 0.0
    %588 = vmatpush2.msra.mxu0 0.0
    %589 = vmatprep.subr.mxu0 0.0
    %590 = vmatpush2.msra.mxu0 0.0
    %591 = vmatprep.subr.mxu0 0.0
    %592 = vmatpush2.msra.mxu0 0.0
    %593 = vmatprep.subr.mxu0 0.0
    %594 = vmatpush2.msra.mxu0 0.0
    %595 = vmatprep.subr.mxu0 0.0
    %596 = vmatpush2.msra.mxu0 0.0
    %597 = vmatprep.subr.mxu0 0.0
    %598 = vmatpush2.msra.mxu0 0.0
    %599 = vmatprep.subr.mxu0 0.0
    %600 = vmatpush2.msra.mxu0 0.0
    %601 = vmatprep.subr.mxu0 0.0
    %602 = vmatpush2.msra.mxu0 0.0
    %603 = vmatprep.subr.mxu0 0.0
    %604 = vmatpush2.msra.mxu0 0.0
    %605 = vmatprep.subr.mxu0 0.0
    %606 = vmatpush2.msra.mxu0 0.0
    %607 = vmatprep.mubr.f32.mxu0 0.0
    %608 = vmatmul.mubr.f32.gmra.mxu0 %v532
    %v609 = vpop.f32.mrf.mxu0
    %v610 = vadd.f32 %v514, %v609
    %v611 = vpop.f32.mrf.mxu0
    %612 = vmatprep.mubr.f32.mxu0 0.0
    %613 = vmatmul.mubr.f32.gmra.mxu0 %v535
    %v614 = vpop.f32.mrf.mxu0
    %v615 = vadd.f32 %v519, %v614
    %v616 = vpop.f32.mrf.mxu0
    %617 = vmatprep.mubr.f32.mxu0 0.0
    %618 = vmatmul.mubr.f32.gmra.mxu0 %v538
    %v619 = vpop.f32.mrf.mxu0
    %v620 = vadd.f32 %v524, %v619
    %v621 = vpop.f32.mrf.mxu0
    %622 = vmatprep.mubr.f32.mxu0 0.0
    %623 = vmatmul.mubr.f32.gmra.mxu0 %v541
    %v624 = vpop.f32.mrf.mxu0
    %v625 = vadd.f32 %v529, %v624
    %v626 = vpop.f32.mrf.mxu0
    %627 = vdwg.mxu0
    %v628 = vmax.f32 %v610, 0.0
    %v629 = vmax.f32 %v615, 0.0
    %v630 = vmax.f32 %v620, 0.0
    %v631 = vmax.f32 %v625, 0.0
    %s632 = scalar_lea.vmem %s2, 96
    %v633 = vld [vmem:[%s632] sm:$0xff]
    %v634 = vld [vmem:[%s632 + $0x8] sm:$0xff]
    %v635 = vld [vmem:[%s632 + $0x10] sm:$0xff]
    %v636 = vld [vmem:[%s632 + $0x18] sm:$0xff]
    %v638 = vsel %vm399, %v633, 0
    %v641 = vsel %vm399, %v634, 0
    %v644 = vsel %vm399, %v635, 0
    %v647 = vsel %vm399, %v636, 0
    %649 = vmatprep.subr.mxu0 0.0
    %650 = vmatpush1.msra.mxu0 0.0
    %651 = vmatprep.subr.mxu0 0.0
    %652 = vmatpush1.msra.mxu0 0.0
    %653 = vmatprep.subr.mxu0 0.0
    %654 = vmatpush1.msra.mxu0 0.0
    %655 = vmatprep.subr.mxu0 0.0
    %656 = vmatpush1.msra.mxu0 0.0
    %657 = vmatprep.subr.mxu0 0.0
    %658 = vmatpush1.msra.mxu0 0.0
    %659 = vmatprep.subr.mxu0 0.0
    %660 = vmatpush1.msra.mxu0 0.0
    %661 = vmatprep.subr.mxu0 0.0
    %662 = vmatpush1.msra.mxu0 0.0
    %663 = vmatprep.subr.mxu0 0.0
    %664 = vmatpush1.msra.mxu0 0.0
    %665 = vmatprep.subr.mxu0 0.0
    %666 = vmatpush1.msra.mxu0 0.0
    %667 = vmatprep.subr.mxu0 0.0
    %668 = vmatpush1.msra.mxu0 0.0
    %669 = vmatprep.subr.mxu0 0.0
    %670 = vmatpush1.msra.mxu0 0.0
    %671 = vmatprep.subr.mxu0 0.0
    %672 = vmatpush1.msra.mxu0 0.0
    %673 = vmatprep.subr.mxu0 0.0
    %674 = vmatpush1.msra.mxu0 %v631
    %675 = vmatprep.subr.mxu0 0.0
    %676 = vmatpush1.msra.mxu0 %v630
    %677 = vmatprep.subr.mxu0 0.0
    %678 = vmatpush1.msra.mxu0 %v629
    %679 = vmatprep.subr.mxu0 0.0
    %680 = vmatpush1.msra.mxu0 %v628
    %681 = vmatprep.subr.mxu0 0.0
    %682 = vmatpush2.msra.mxu0 0.0
    %683 = vmatprep.subr.mxu0 0.0
    %684 = vmatpush2.msra.mxu0 0.0
    %685 = vmatprep.subr.mxu0 0.0
    %686 = vmatpush2.msra.mxu0 0.0
    %687 = vmatprep.subr.mxu0 0.0
    %688 = vmatpush2.msra.mxu0 0.0
    %689 = vmatprep.subr.mxu0 0.0
    %690 = vmatpush2.msra.mxu0 0.0
    %691 = vmatprep.subr.mxu0 0.0
    %692 = vmatpush2.msra.mxu0 0.0
    %693 = vmatprep.subr.mxu0 0.0
    %694 = vmatpush2.msra.mxu0 0.0
    %695 = vmatprep.subr.mxu0 0.0
    %696 = vmatpush2.msra.mxu0 0.0
    %697 = vmatprep.subr.mxu0 0.0
    %698 = vmatpush2.msra.mxu0 0.0
    %699 = vmatprep.subr.mxu0 0.0
    %700 = vmatpush2.msra.mxu0 0.0
    %701 = vmatprep.subr.mxu0 0.0
    %702 = vmatpush2.msra.mxu0 0.0
    %703 = vmatprep.subr.mxu0 0.0
    %704 = vmatpush2.msra.mxu0 0.0
    %705 = vmatprep.subr.mxu0 0.0
    %706 = vmatpush2.msra.mxu0 0.0
    %707 = vmatprep.subr.mxu0 0.0
    %708 = vmatpush2.msra.mxu0 0.0
    %709 = vmatprep.subr.mxu0 0.0
    %710 = vmatpush2.msra.mxu0 0.0
    %711 = vmatprep.subr.mxu0 0.0
    %712 = vmatpush2.msra.mxu0 0.0
    %713 = vmatprep.mubr.f32.mxu0 0.0
    %714 = vmatmul.mubr.f32.gmra.mxu0 %v638
    %v715 = vpop.f32.mrf.mxu0
    %v716 = vadd.f32 0.0, %v715
    %v717 = vpop.f32.mrf.mxu0
    %718 = vmatprep.mubr.f32.mxu0 0.0
    %719 = vmatmul.mubr.f32.gmra.mxu0 %v641
    %v720 = vpop.f32.mrf.mxu0
    %v721 = vadd.f32 0.0, %v720
    %v722 = vpop.f32.mrf.mxu0
    %723 = vmatprep.mubr.f32.mxu0 0.0
    %724 = vmatmul.mubr.f32.gmra.mxu0 %v644
    %v725 = vpop.f32.mrf.mxu0
    %v726 = vadd.f32 0.0, %v725
    %v727 = vpop.f32.mrf.mxu0
    %728 = vmatprep.mubr.f32.mxu0 0.0
    %729 = vmatmul.mubr.f32.gmra.mxu0 %v647
    %v730 = vpop.f32.mrf.mxu0
    %v731 = vadd.f32 0.0, %v730
    %v732 = vpop.f32.mrf.mxu0
    %733 = vdwg.mxu0
    %s734 = scalar_lea.vmem %s2, 128
    %v735 = vld [vmem:[%s734] sm:$0xff]
    %v736 = vld [vmem:[%s734 + $0x8] sm:$0xff]
    %v737 = vld [vmem:[%s734 + $0x10] sm:$0xff]
    %v738 = vld [vmem:[%s734 + $0x18] sm:$0xff]
    %v740 = vsel %vm399, %v735, 0
    %v743 = vsel %vm399, %v736, 0
    %v746 = vsel %vm399, %v737, 0
    %v749 = vsel %vm399, %v738, 0
    %751 = vmatprep.subr.mxu0 0.0
    %752 = vmatpush1.msra.mxu0 0.0
    %753 = vmatprep.subr.mxu0 0.0
    %754 = vmatpush1.msra.mxu0 0.0
    %755 = vmatprep.subr.mxu0 0.0
    %756 = vmatpush1.msra.mxu0 0.0
    %757 = vmatprep.subr.mxu0 0.0
    %758 = vmatpush1.msra.mxu0 0.0
    %759 = vmatprep.subr.mxu0 0.0
    %760 = vmatpush1.msra.mxu0 0.0
    %761 = vmatprep.subr.mxu0 0.0
    %762 = vmatpush1.msra.mxu0 0.0
    %763 = vmatprep.subr.mxu0 0.0
    %764 = vmatpush1.msra.mxu0 0.0
    %765 = vmatprep.subr.mxu0 0.0
    %766 = vmatpush1.msra.mxu0 0.0
    %767 = vmatprep.subr.mxu0 0.0
    %768 = vmatpush1.msra.mxu0 0.0
    %769 = vmatprep.subr.mxu0 0.0
    %770 = vmatpush1.msra.mxu0 0.0
    %771 = vmatprep.subr.mxu0 0.0
    %772 = vmatpush1.msra.mxu0 0.0
    %773 = vmatprep.subr.mxu0 0.0
    %774 = vmatpush1.msra.mxu0 0.0
    %775 = vmatprep.subr.mxu0 0.0
    %776 = vmatpush1.msra.mxu0 %v631
    %777 = vmatprep.subr.mxu0 0.0
    %778 = vmatpush1.msra.mxu0 %v630
    %779 = vmatprep.subr.mxu0 0.0
    %780 = vmatpush1.msra.mxu0 %v629
    %781 = vmatprep.subr.mxu0 0.0
    %782 = vmatpush1.msra.mxu0 %v628
    %783 = vmatprep.subr.mxu0 0.0
    %784 = vmatpush2.msra.mxu0 0.0
    %785 = vmatprep.subr.mxu0 0.0
    %786 = vmatpush2.msra.mxu0 0.0
    %787 = vmatprep.subr.mxu0 0.0
    %788 = vmatpush2.msra.mxu0 0.0
    %789 = vmatprep.subr.mxu0 0.0
    %790 = vmatpush2.msra.mxu0 0.0
    %791 = vmatprep.subr.mxu0 0.0
    %792 = vmatpush2.msra.mxu0 0.0
    %793 = vmatprep.subr.mxu0 0.0
    %794 = vmatpush2.msra.mxu0 0.0
    %795 = vmatprep.subr.mxu0 0.0
    %796 = vmatpush2.msra.mxu0 0.0
    %797 = vmatprep.subr.mxu0 0.0
    %798 = vmatpush2.msra.mxu0 0.0
    %799 = vmatprep.subr.mxu0 0.0
    %800 = vmatpush2.msra.mxu0 0.0
    %801 = vmatprep.subr.mxu0 0.0
    %802 = vmatpush2.msra.mxu0 0.0
    %803 = vmatprep.subr.mxu0 0.0
    %804 = vmatpush2.msra.mxu0 0.0
    %805 = vmatprep.subr.mxu0 0.0
    %806 = vmatpush2.msra.mxu0 0.0
    %807 = vmatprep.subr.mxu0 0.0
    %808 = vmatpush2.msra.mxu0 0.0
    %809 = vmatprep.subr.mxu0 0.0
    %810 = vmatpush2.msra.mxu0 0.0
    %811 = vmatprep.subr.mxu0 0.0
    %812 = vmatpush2.msra.mxu0 0.0
    %813 = vmatprep.subr.mxu0 0.0
    %814 = vmatpush2.msra.mxu0 0.0
    %815 = vmatprep.mubr.f32.mxu0 0.0
    %816 = vmatmul.mubr.f32.gmra.mxu0 %v740
    %v817 = vpop.f32.mrf.mxu0
    %v818 = vadd.f32 0.0, %v817
    %v819 = vpop.f32.mrf.mxu0
    %820 = vmatprep.mubr.f32.mxu0 0.0
    %821 = vmatmul.mubr.f32.gmra.mxu0 %v743
    %v822 = vpop.f32.mrf.mxu0
    %v823 = vadd.f32 0.0, %v822
    %v824 = vpop.f32.mrf.mxu0
    %825 = vmatprep.mubr.f32.mxu0 0.0
    %826 = vmatmul.mubr.f32.gmra.mxu0 %v746
    %v827 = vpop.f32.mrf.mxu0
    %v828 = vadd.f32 0.0, %v827
    %v829 = vpop.f32.mrf.mxu0
    %830 = vmatprep.mubr.f32.mxu0 0.0
    %831 = vmatmul.mubr.f32.gmra.mxu0 %v749
    %v832 = vpop.f32.mrf.mxu0
    %v833 = vadd.f32 0.0, %v832
    %v834 = vpop.f32.mrf.mxu0
    %835 = vdwg.mxu0
    %vm836 = vcmask 523264
    %v838 = vsel %vm836, %v818, 0
    %v841 = vsel %vm836, %v823, 0
    %v844 = vsel %vm836, %v828, 0
    %v847 = vsel %vm836, %v833, 0
    %849 = vmatprep.subr.mxu0 0.0
    %850 = vmatpush1.msra.mxu0 0.0
    %851 = vmatprep.subr.mxu0 0.0
    %852 = vmatpush1.msra.mxu0 0.0
    %853 = vmatprep.subr.mxu0 0.0
    %854 = vmatpush1.msra.mxu0 0.0
    %855 = vmatprep.subr.mxu0 0.0
    %856 = vmatpush1.msra.mxu0 0.0
    %857 = vmatprep.subr.mxu0 0.0
    %858 = vmatpush1.msra.mxu0 0.0
    %859 = vmatprep.subr.mxu0 0.0
    %860 = vmatpush1.msra.mxu0 0.0
    %861 = vmatprep.subr.mxu0 0.0
    %862 = vmatpush1.msra.mxu0 0.0
    %863 = vmatprep.subr.mxu0 0.0
    %864 = vmatpush1.msra.mxu0 0.0
    %865 = vmatprep.subr.mxu0 %v178
    %866 = vmatpush1.msra.mxu0 %v177
    %867 = vmatprep.subr.mxu0 %v174
    %868 = vmatpush1.msra.mxu0 %v173
    %869 = vmatprep.subr.mxu0 %v170
    %870 = vmatpush1.msra.mxu0 %v169
    %871 = vmatprep.subr.mxu0 %v166
    %872 = vmatpush1.msra.mxu0 %v165
    %873 = vmatprep.subr.mxu0 %v162
    %874 = vmatpush1.msra.mxu0 %v161
    %875 = vmatprep.subr.mxu0 %v158
    %876 = vmatpush1.msra.mxu0 %v157
    %877 = vmatprep.subr.mxu0 %v154
    %878 = vmatpush1.msra.mxu0 %v153
    %879 = vmatprep.subr.mxu0 %v150
    %880 = vmatpush1.msra.mxu0 %v149
    %881 = vmatprep.subr.mxu0 0.0
    %882 = vmatpush2.msra.mxu0 0.0
    %883 = vmatprep.subr.mxu0 0.0
    %884 = vmatpush2.msra.mxu0 0.0
    %885 = vmatprep.subr.mxu0 0.0
    %886 = vmatpush2.msra.mxu0 0.0
    %887 = vmatprep.subr.mxu0 0.0
    %888 = vmatpush2.msra.mxu0 0.0
    %889 = vmatprep.subr.mxu0 0.0
    %890 = vmatpush2.msra.mxu0 0.0
    %891 = vmatprep.subr.mxu0 0.0
    %892 = vmatpush2.msra.mxu0 0.0
    %893 = vmatprep.subr.mxu0 0.0
    %894 = vmatpush2.msra.mxu0 0.0
    %895 = vmatprep.subr.mxu0 0.0
    %896 = vmatpush2.msra.mxu0 0.0
    %897 = vmatprep.subr.mxu0 0.0
    %898 = vmatpush2.msra.mxu0 0.0
    %899 = vmatprep.subr.mxu0 0.0
    %900 = vmatpush2.msra.mxu0 0.0
    %901 = vmatprep.subr.mxu0 0.0
    %902 = vmatpush2.msra.mxu0 0.0
    %903 = vmatprep.subr.mxu0 0.0
    %904 = vmatpush2.msra.mxu0 0.0
    %905 = vmatprep.subr.mxu0 0.0
    %906 = vmatpush2.msra.mxu0 0.0
    %907 = vmatprep.subr.mxu0 0.0
    %908 = vmatpush2.msra.mxu0 0.0
    %909 = vmatprep.subr.mxu0 0.0
    %910 = vmatpush2.msra.mxu0 0.0
    %911 = vmatprep.subr.mxu0 0.0
    %912 = vmatpush2.msra.mxu0 0.0
    %913 = vmatprep.mubr.f32.mxu0 0.0
    %914 = vmatmul.mubr.f32.gmra.mxu0 %v838
    %v915 = vpop.f32.mrf.mxu0
    %v916 = vadd.f32 0.0, %v915
    %v917 = vpop.f32.mrf.mxu0
    %v918 = vadd.f32 0.0, %v917
    %919 = vmatprep.mubr.f32.mxu0 0.0
    %920 = vmatmul.mubr.f32.gmra.mxu0 %v841
    %v921 = vpop.f32.mrf.mxu0
    %v922 = vadd.f32 0.0, %v921
    %v923 = vpop.f32.mrf.mxu0
    %v924 = vadd.f32 0.0, %v923
    %925 = vmatprep.mubr.f32.mxu0 0.0
    %926 = vmatmul.mubr.f32.gmra.mxu0 %v844
    %v927 = vpop.f32.mrf.mxu0
    %v928 = vadd.f32 0.0, %v927
    %v929 = vpop.f32.mrf.mxu0
    %v930 = vadd.f32 0.0, %v929
    %931 = vmatprep.mubr.f32.mxu0 0.0
    %932 = vmatmul.mubr.f32.gmra.mxu0 %v847
    %v933 = vpop.f32.mrf.mxu0
    %v934 = vadd.f32 0.0, %v933
    %v935 = vpop.f32.mrf.mxu0
    %v936 = vadd.f32 0.0, %v935
    %937 = vdwg.mxu0
    %v939 = vsel %vm836, %v716, 0
    %v942 = vsel %vm836, %v721, 0
    %v945 = vsel %vm836, %v726, 0
    %v948 = vsel %vm836, %v731, 0
    %950 = vmatprep.subr.mxu0 0.0
    %951 = vmatpush1.msra.mxu0 0.0
    %952 = vmatprep.subr.mxu0 0.0
    %953 = vmatpush1.msra.mxu0 0.0
    %954 = vmatprep.subr.mxu0 0.0
    %955 = vmatpush1.msra.mxu0 0.0
    %956 = vmatprep.subr.mxu0 0.0
    %957 = vmatpush1.msra.mxu0 0.0
    %958 = vmatprep.subr.mxu0 0.0
    %959 = vmatpush1.msra.mxu0 0.0
    %960 = vmatprep.subr.mxu0 0.0
    %961 = vmatpush1.msra.mxu0 0.0
    %962 = vmatprep.subr.mxu0 0.0
    %963 = vmatpush1.msra.mxu0 0.0
    %964 = vmatprep.subr.mxu0 0.0
    %965 = vmatpush1.msra.mxu0 0.0
    %966 = vmatprep.subr.mxu0 %v176
    %967 = vmatpush1.msra.mxu0 %v175
    %968 = vmatprep.subr.mxu0 %v172
    %969 = vmatpush1.msra.mxu0 %v171
    %970 = vmatprep.subr.mxu0 %v168
    %971 = vmatpush1.msra.mxu0 %v167
    %972 = vmatprep.subr.mxu0 %v164
    %973 = vmatpush1.msra.mxu0 %v163
    %974 = vmatprep.subr.mxu0 %v160
    %975 = vmatpush1.msra.mxu0 %v159
    %976 = vmatprep.subr.mxu0 %v156
    %977 = vmatpush1.msra.mxu0 %v155
    %978 = vmatprep.subr.mxu0 %v152
    %979 = vmatpush1.msra.mxu0 %v151
    %980 = vmatprep.subr.mxu0 %v148
    %981 = vmatpush1.msra.mxu0 %v147
    %982 = vmatprep.subr.mxu0 0.0
    %983 = vmatpush2.msra.mxu0 0.0
    %984 = vmatprep.subr.mxu0 0.0
    %985 = vmatpush2.msra.mxu0 0.0
    %986 = vmatprep.subr.mxu0 0.0
    %987 = vmatpush2.msra.mxu0 0.0
    %988 = vmatprep.subr.mxu0 0.0
    %989 = vmatpush2.msra.mxu0 0.0
    %990 = vmatprep.subr.mxu0 0.0
    %991 = vmatpush2.msra.mxu0 0.0
    %992 = vmatprep.subr.mxu0 0.0
    %993 = vmatpush2.msra.mxu0 0.0
    %994 = vmatprep.subr.mxu0 0.0
    %995 = vmatpush2.msra.mxu0 0.0
    %996 = vmatprep.subr.mxu0 0.0
    %997 = vmatpush2.msra.mxu0 0.0
    %998 = vmatprep.subr.mxu0 0.0
    %999 = vmatpush2.msra.mxu0 0.0
    %1000 = vmatprep.subr.mxu0 0.0
    %1001 = vmatpush2.msra.mxu0 0.0
    %1002 = vmatprep.subr.mxu0 0.0
    %1003 = vmatpush2.msra.mxu0 0.0
    %1004 = vmatprep.subr.mxu0 0.0
    %1005 = vmatpush2.msra.mxu0 0.0
    %1006 = vmatprep.subr.mxu0 0.0
    %1007 = vmatpush2.msra.mxu0 0.0
    %1008 = vmatprep.subr.mxu0 0.0
    %1009 = vmatpush2.msra.mxu0 0.0
    %1010 = vmatprep.subr.mxu0 0.0
    %1011 = vmatpush2.msra.mxu0 0.0
    %1012 = vmatprep.subr.mxu0 0.0
    %1013 = vmatpush2.msra.mxu0 0.0
    %1014 = vmatprep.mubr.f32.mxu0 0.0
    %1015 = vmatmul.mubr.f32.gmra.mxu0 %v939
    %v1016 = vpop.f32.mrf.mxu0
    %v1017 = vadd.f32 %v916, %v1016
    %v1018 = vpop.f32.mrf.mxu0
    %v1019 = vadd.f32 %v918, %v1018
    %1020 = vmatprep.mubr.f32.mxu0 0.0
    %1021 = vmatmul.mubr.f32.gmra.mxu0 %v942
    %v1022 = vpop.f32.mrf.mxu0
    %v1023 = vadd.f32 %v922, %v1022
    %v1024 = vpop.f32.mrf.mxu0
    %v1025 = vadd.f32 %v924, %v1024
    %1026 = vmatprep.mubr.f32.mxu0 0.0
    %1027 = vmatmul.mubr.f32.gmra.mxu0 %v945
    %v1028 = vpop.f32.mrf.mxu0
    %v1029 = vadd.f32 %v928, %v1028
    %v1030 = vpop.f32.mrf.mxu0
    %v1031 = vadd.f32 %v930, %v1030
    %1032 = vmatprep.mubr.f32.mxu0 0.0
    %1033 = vmatmul.mubr.f32.gmra.mxu0 %v948
    %v1034 = vpop.f32.mrf.mxu0
    %v1035 = vadd.f32 %v934, %v1034
    %v1036 = vpop.f32.mrf.mxu0
    %v1037 = vadd.f32 %v936, %v1036
    %1038 = vdwg.mxu0
    %s1039 = scalar_lea.vmem %s3, 96
    %v1040 = vld [vmem:[%s1039] sm:$0xff]
    %v1041 = vld [vmem:[%s1039 + $0x8] sm:$0xff]
    %v1042 = vld [vmem:[%s1039 + $0x10] sm:$0xff]
    %v1043 = vld [vmem:[%s1039 + $0x18] sm:$0xff]
    %1045 = vset.pattern.permute.xlu0 0
    %1046 = vperm.xlu0 %1045, %v1040
    %v1047 = vpop.permute.xlu0 %1046
    %1050 = vset.pattern.permute.xlu0 0
    %1051 = vperm.xlu0 %1050, %v1041
    %v1052 = vpop.permute.xlu0 %1051
    %1055 = vset.pattern.permute.xlu0 0
    %1056 = vperm.xlu0 %1055, %v1042
    %v1057 = vpop.permute.xlu0 %1056
    %1060 = vset.pattern.permute.xlu0 0
    %1061 = vperm.xlu0 %1060, %v1043
    %v1062 = vpop.permute.xlu0 %1061
    %v1064 = vadd.f32 %v1017, %v1047
    %v1065 = vadd.f32 %v1019, %v1047
    %v1066 = vadd.f32 %v1023, %v1052
    %v1067 = vadd.f32 %v1025, %v1052
    %v1068 = vadd.f32 %v1029, %v1057
    %v1069 = vadd.f32 %v1031, %v1057
    %v1070 = vadd.f32 %v1035, %v1062
    %v1071 = vadd.f32 %v1037, %v1062
    %v1072 = vmax.f32 %v1064, 0.0
    %v1073 = vmax.f32 %v1065, 0.0
    %v1074 = vmax.f32 %v1066, 0.0
    %v1075 = vmax.f32 %v1067, 0.0
    %v1076 = vmax.f32 %v1068, 0.0
    %v1077 = vmax.f32 %v1069, 0.0
    %v1078 = vmax.f32 %v1070, 0.0
    %v1079 = vmax.f32 %v1071, 0.0
    %s1080 = scalar_lea.vmem %s2, 160
    %v1081 = vld [vmem:[%s1080] sm:$0xff]
    %v1082 = vld [vmem:[%s1080 + $0x8] sm:$0xff]
    %v1083 = vld [vmem:[%s1080 + $0x10] sm:$0xff]
    %v1084 = vld [vmem:[%s1080 + $0x18] sm:$0xff]
    %s1085 = scalar_lea.vmem %s3, 128
    %v1086 = vld [vmem:[%s1085] sm:$0xff]
    %v1087 = vld [vmem:[%s1085 + $0x8] sm:$0xff]
    %v1088 = vld [vmem:[%s1085 + $0x10] sm:$0xff]
    %v1089 = vld [vmem:[%s1085 + $0x18] sm:$0xff]
    %1091 = vset.pattern.permute.xlu0 0
    %1092 = vperm.xlu0 %1091, %v1086
    %v1093 = vpop.permute.xlu0 %1092
    %1096 = vset.pattern.permute.xlu0 0
    %1097 = vperm.xlu0 %1096, %v1087
    %v1098 = vpop.permute.xlu0 %1097
    %1101 = vset.pattern.permute.xlu0 0
    %1102 = vperm.xlu0 %1101, %v1088
    %v1103 = vpop.permute.xlu0 %1102
    %1106 = vset.pattern.permute.xlu0 0
    %1107 = vperm.xlu0 %1106, %v1089
    %v1108 = vpop.permute.xlu0 %1107
    %v1111 = vsel %vm399, %v1081, 0
    %v1114 = vsel %vm399, %v1082, 0
    %v1117 = vsel %vm399, %v1083, 0
    %v1120 = vsel %vm399, %v1084, 0
    %1122 = vmatprep.subr.mxu0 0.0
    %1123 = vmatpush1.msra.mxu0 0.0
    %1124 = vmatprep.subr.mxu0 0.0
    %1125 = vmatpush1.msra.mxu0 0.0
    %1126 = vmatprep.subr.mxu0 0.0
    %1127 = vmatpush1.msra.mxu0 0.0
    %1128 = vmatprep.subr.mxu0 0.0
    %1129 = vmatpush1.msra.mxu0 0.0
    %1130 = vmatprep.subr.mxu0 0.0
    %1131 = vmatpush1.msra.mxu0 0.0
    %1132 = vmatprep.subr.mxu0 0.0
    %1133 = vmatpush1.msra.mxu0 0.0
    %1134 = vmatprep.subr.mxu0 0.0
    %1135 = vmatpush1.msra.mxu0 0.0
    %1136 = vmatprep.subr.mxu0 0.0
    %1137 = vmatpush1.msra.mxu0 0.0
    %1138 = vmatprep.subr.mxu0 0.0
    %1139 = vmatpush1.msra.mxu0 0.0
    %1140 = vmatprep.subr.mxu0 0.0
    %1141 = vmatpush1.msra.mxu0 0.0
    %1142 = vmatprep.subr.mxu0 0.0
    %1143 = vmatpush1.msra.mxu0 0.0
    %1144 = vmatprep.subr.mxu0 0.0
    %1145 = vmatpush1.msra.mxu0 0.0
    %1146 = vmatprep.subr.mxu0 %v1079
    %1147 = vmatpush1.msra.mxu0 %v1078
    %1148 = vmatprep.subr.mxu0 %v1077
    %1149 = vmatpush1.msra.mxu0 %v1076
    %1150 = vmatprep.subr.mxu0 %v1075
    %1151 = vmatpush1.msra.mxu0 %v1074
    %1152 = vmatprep.subr.mxu0 %v1073
    %1153 = vmatpush1.msra.mxu0 %v1072
    %1154 = vmatprep.subr.mxu0 0.0
    %1155 = vmatpush2.msra.mxu0 0.0
    %1156 = vmatprep.subr.mxu0 0.0
    %1157 = vmatpush2.msra.mxu0 0.0
    %1158 = vmatprep.subr.mxu0 0.0
    %1159 = vmatpush2.msra.mxu0 0.0
    %1160 = vmatprep.subr.mxu0 0.0
    %1161 = vmatpush2.msra.mxu0 0.0
    %1162 = vmatprep.subr.mxu0 0.0
    %1163 = vmatpush2.msra.mxu0 0.0
    %1164 = vmatprep.subr.mxu0 0.0
    %1165 = vmatpush2.msra.mxu0 0.0
    %1166 = vmatprep.subr.mxu0 0.0
    %1167 = vmatpush2.msra.mxu0 0.0
    %1168 = vmatprep.subr.mxu0 0.0
    %1169 = vmatpush2.msra.mxu0 0.0
    %1170 = vmatprep.subr.mxu0 0.0
    %1171 = vmatpush2.msra.mxu0 0.0
    %1172 = vmatprep.subr.mxu0 0.0
    %1173 = vmatpush2.msra.mxu0 0.0
    %1174 = vmatprep.subr.mxu0 0.0
    %1175 = vmatpush2.msra.mxu0 0.0
    %1176 = vmatprep.subr.mxu0 0.0
    %1177 = vmatpush2.msra.mxu0 0.0
    %1178 = vmatprep.subr.mxu0 0.0
    %1179 = vmatpush2.msra.mxu0 0.0
    %1180 = vmatprep.subr.mxu0 0.0
    %1181 = vmatpush2.msra.mxu0 0.0
    %1182 = vmatprep.subr.mxu0 0.0
    %1183 = vmatpush2.msra.mxu0 0.0
    %1184 = vmatprep.subr.mxu0 0.0
    %1185 = vmatpush2.msra.mxu0 0.0
    %1186 = vmatprep.mubr.f32.mxu0 0.0
    %1187 = vmatmul.mubr.f32.gmra.mxu0 %v1111
    %v1188 = vpop.f32.mrf.mxu0
    %v1189 = vadd.f32 %v1093, %v1188
    %v1190 = vpop.f32.mrf.mxu0
    %v1191 = vadd.f32 %v1093, %v1190
    %1192 = vmatprep.mubr.f32.mxu0 0.0
    %1193 = vmatmul.mubr.f32.gmra.mxu0 %v1114
    %v1194 = vpop.f32.mrf.mxu0
    %v1195 = vadd.f32 %v1098, %v1194
    %v1196 = vpop.f32.mrf.mxu0
    %v1197 = vadd.f32 %v1098, %v1196
    %1198 = vmatprep.mubr.f32.mxu0 0.0
    %1199 = vmatmul.mubr.f32.gmra.mxu0 %v1117
    %v1200 = vpop.f32.mrf.mxu0
    %v1201 = vadd.f32 %v1103, %v1200
    %v1202 = vpop.f32.mrf.mxu0
    %v1203 = vadd.f32 %v1103, %v1202
    %1204 = vmatprep.mubr.f32.mxu0 0.0
    %1205 = vmatmul.mubr.f32.gmra.mxu0 %v1120
    %v1206 = vpop.f32.mrf.mxu0
    %v1207 = vadd.f32 %v1108, %v1206
    %v1208 = vpop.f32.mrf.mxu0
    %v1209 = vadd.f32 %v1108, %v1208
    %1210 = vdwg.mxu0
    %v1211 = vmax.f32 %v1189, 0.0
    %v1212 = vmax.f32 %v1191, 0.0
    %v1213 = vmax.f32 %v1195, 0.0
    %v1214 = vmax.f32 %v1197, 0.0
    %v1215 = vmax.f32 %v1201, 0.0
    %v1216 = vmax.f32 %v1203, 0.0
    %v1217 = vmax.f32 %v1207, 0.0
    %v1218 = vmax.f32 %v1209, 0.0
    %s1219 = scalar_lea.vmem %s2, 192
    %v1220 = vld [vmem:[%s1219] sm:$0x3]
    %s1221 = scalar_lea.vmem %s3, 160
    %v1222 = vld [vmem:[%s1221] sm:$0x3]
    %1224 = vset.pattern.permute.xlu0 0
    %1225 = vperm.xlu0 %1224, %v1222
    %v1226 = vpop.permute.xlu0 %1225
    %v1229 = vsel %vm399, %v1220, 0
    %1231 = vmatprep.subr.mxu0 0.0
    %1232 = vmatpush1.msra.mxu0 0.0
    %1233 = vmatprep.subr.mxu0 0.0
    %1234 = vmatpush1.msra.mxu0 0.0
    %1235 = vmatprep.subr.mxu0 0.0
    %1236 = vmatpush1.msra.mxu0 0.0
    %1237 = vmatprep.subr.mxu0 0.0
    %1238 = vmatpush1.msra.mxu0 0.0
    %1239 = vmatprep.subr.mxu0 0.0
    %1240 = vmatpush1.msra.mxu0 0.0
    %1241 = vmatprep.subr.mxu0 0.0
    %1242 = vmatpush1.msra.mxu0 0.0
    %1243 = vmatprep.subr.mxu0 0.0
    %1244 = vmatpush1.msra.mxu0 0.0
    %1245 = vmatprep.subr.mxu0 0.0
    %1246 = vmatpush1.msra.mxu0 0.0
    %1247 = vmatprep.subr.mxu0 0.0
    %1248 = vmatpush1.msra.mxu0 0.0
    %1249 = vmatprep.subr.mxu0 0.0
    %1250 = vmatpush1.msra.mxu0 0.0
    %1251 = vmatprep.subr.mxu0 0.0
    %1252 = vmatpush1.msra.mxu0 0.0
    %1253 = vmatprep.subr.mxu0 0.0
    %1254 = vmatpush1.msra.mxu0 0.0
    %1255 = vmatprep.subr.mxu0 %v1218
    %1256 = vmatpush1.msra.mxu0 %v1217
    %1257 = vmatprep.subr.mxu0 %v1216
    %1258 = vmatpush1.msra.mxu0 %v1215
    %1259 = vmatprep.subr.mxu0 %v1214
    %1260 = vmatpush1.msra.mxu0 %v1213
    %1261 = vmatprep.subr.mxu0 %v1212
    %1262 = vmatpush1.msra.mxu0 %v1211
    %1263 = vmatprep.subr.mxu0 0.0
    %1264 = vmatpush2.msra.mxu0 0.0
    %1265 = vmatprep.subr.mxu0 0.0
    %1266 = vmatpush2.msra.mxu0 0.0
    %1267 = vmatprep.subr.mxu0 0.0
    %1268 = vmatpush2.msra.mxu0 0.0
    %1269 = vmatprep.subr.mxu0 0.0
    %1270 = vmatpush2.msra.mxu0 0.0
    %1271 = vmatprep.subr.mxu0 0.0
    %1272 = vmatpush2.msra.mxu0 0.0
    %1273 = vmatprep.subr.mxu0 0.0
    %1274 = vmatpush2.msra.mxu0 0.0
    %1275 = vmatprep.subr.mxu0 0.0
    %1276 = vmatpush2.msra.mxu0 0.0
    %1277 = vmatprep.subr.mxu0 0.0
    %1278 = vmatpush2.msra.mxu0 0.0
    %1279 = vmatprep.subr.mxu0 0.0
    %1280 = vmatpush2.msra.mxu0 0.0
    %1281 = vmatprep.subr.mxu0 0.0
    %1282 = vmatpush2.msra.mxu0 0.0
    %1283 = vmatprep.subr.mxu0 0.0
    %1284 = vmatpush2.msra.mxu0 0.0
    %1285 = vmatprep.subr.mxu0 0.0
    %1286 = vmatpush2.msra.mxu0 0.0
    %1287 = vmatprep.subr.mxu0 0.0
    %1288 = vmatpush2.msra.mxu0 0.0
    %1289 = vmatprep.subr.mxu0 0.0
    %1290 = vmatpush2.msra.mxu0 0.0
    %1291 = vmatprep.subr.mxu0 0.0
    %1292 = vmatpush2.msra.mxu0 0.0
    %1293 = vmatprep.subr.mxu0 0.0
    %1294 = vmatpush2.msra.mxu0 0.0
    %1295 = vmatprep.mubr.f32.mxu0 0.0
    %1296 = vmatmul.mubr.f32.gmra.mxu0 %v1229
    %v1297 = vpop.f32.mrf.mxu0
    %v1298 = vadd.f32 %v1226, %v1297
    %v1299 = vpop.f32.mrf.mxu0
    %v1300 = vadd.f32 %v1226, %v1299
    %1301 = vdwg.mxu0
    %v1302 = vmax.f32 %v1298, 0.0
    %v1303 = vmax.f32 %v1300, 0.0
    %1304 = vmatprep.subr.mxu0 0.0
    %1305 = vmatpush1.xpose.msra.mxu0 0.0
    %1306 = vmatprep.subr.mxu0 0.0
    %1307 = vmatpush1.xpose.msra.mxu0 0.0
    %1308 = vmatprep.subr.mxu0 0.0
    %1309 = vmatpush1.xpose.msra.mxu0 0.0
    %1310 = vmatprep.subr.mxu0 0.0
    %1311 = vmatpush1.xpose.msra.mxu0 0.0
    %1312 = vmatprep.subr.mxu0 0.0
    %1313 = vmatpush1.xpose.msra.mxu0 0.0
    %1314 = vmatprep.subr.mxu0 0.0
    %1315 = vmatpush1.xpose.msra.mxu0 0.0
    %1316 = vmatprep.subr.mxu0 0.0
    %1317 = vmatpush1.xpose.msra.mxu0 0.0
    %1318 = vmatprep.subr.mxu0 0.0
    %1319 = vmatpush1.xpose.msra.mxu0 0.0
    %1320 = vmatprep.subr.mxu0 %v234
    %1321 = vmatpush1.xpose.msra.mxu0 %v233
    %1322 = vmatprep.subr.mxu0 %v232
    %1323 = vmatpush1.xpose.msra.mxu0 %v231
    %1324 = vmatprep.subr.mxu0 %v230
    %1325 = vmatpush1.xpose.msra.mxu0 %v229
    %1326 = vmatprep.subr.mxu0 %v228
    %1327 = vmatpush1.xpose.msra.mxu0 %v227
    %1328 = vmatprep.subr.mxu0 %v226
    %1329 = vmatpush1.xpose.msra.mxu0 %v225
    %1330 = vmatprep.subr.mxu0 %v224
    %1331 = vmatpush1.xpose.msra.mxu0 %v223
    %1332 = vmatprep.subr.mxu0 %v222
    %1333 = vmatpush1.xpose.msra.mxu0 %v221
    %1334 = vmatprep.subr.mxu0 %v220
    %1335 = vmatpush1.xpose.msra.mxu0 %v219
    %1336 = vmatprep.subr.mxu0 0.0
    %1337 = vmatpush2.xpose.msra.mxu0 0.0
    %1338 = vmatprep.subr.mxu0 0.0
    %1339 = vmatpush2.xpose.msra.mxu0 0.0
    %1340 = vmatprep.subr.mxu0 0.0
    %1341 = vmatpush2.xpose.msra.mxu0 0.0
    %1342 = vmatprep.subr.mxu0 0.0
    %1343 = vmatpush2.xpose.msra.mxu0 0.0
    %1344 = vmatprep.subr.mxu0 0.0
    %1345 = vmatpush2.xpose.msra.mxu0 0.0
    %1346 = vmatprep.subr.mxu0 0.0
    %1347 = vmatpush2.xpose.msra.mxu0 0.0
    %1348 = vmatprep.subr.mxu0 0.0
    %1349 = vmatpush2.xpose.msra.mxu0 0.0
    %1350 = vmatprep.subr.mxu0 0.0
    %1351 = vmatpush2.xpose.msra.mxu0 0.0
    %1352 = vmatprep.subr.mxu0 0.0
    %1353 = vmatpush2.xpose.msra.mxu0 0.0
    %1354 = vmatprep.subr.mxu0 0.0
    %1355 = vmatpush2.xpose.msra.mxu0 0.0
    %1356 = vmatprep.subr.mxu0 0.0
    %1357 = vmatpush2.xpose.msra.mxu0 0.0
    %1358 = vmatprep.subr.mxu0 0.0
    %1359 = vmatpush2.xpose.msra.mxu0 0.0
    %1360 = vmatprep.subr.mxu0 0.0
    %1361 = vmatpush2.xpose.msra.mxu0 0.0
    %1362 = vmatprep.subr.mxu0 0.0
    %1363 = vmatpush2.xpose.msra.mxu0 0.0
    %1364 = vmatprep.subr.mxu0 0.0
    %1365 = vmatpush2.xpose.msra.mxu0 0.0
    %1366 = vmatprep.subr.mxu0 0.0
    %1367 = vmatpush2.xpose.msra.mxu0 0.0
    %1368 = vmatprep.mubr.f32.mxu0 %v1303
    %1369 = vmatmul.mubr.f32.gmra.mxu0 %v1302
    %v1370 = vpop.f32.mrf.mxu0
    %v1371 = vadd.f32 0.0, %v1370
    %v1372 = vpop.f32.mrf.mxu0
    %1373 = vdwg.mxu0
    %v1375 = vsel %vm836, %v1371, 0
    %1377 = vmatprep.subr.mxu0 0.0
    %1378 = vmatpush1.msra.mxu0 0.0
    %1379 = vmatprep.subr.mxu0 0.0
    %1380 = vmatpush1.msra.mxu0 0.0
    %1381 = vmatprep.subr.mxu0 0.0
    %1382 = vmatpush1.msra.mxu0 0.0
    %1383 = vmatprep.subr.mxu0 0.0
    %1384 = vmatpush1.msra.mxu0 0.0
    %1385 = vmatprep.subr.mxu0 0.0
    %1386 = vmatpush1.msra.mxu0 0.0
    %1387 = vmatprep.subr.mxu0 0.0
    %1388 = vmatpush1.msra.mxu0 0.0
    %1389 = vmatprep.subr.mxu0 0.0
    %1390 = vmatpush1.msra.mxu0 0.0
    %1391 = vmatprep.subr.mxu0 0.0
    %1392 = vmatpush1.msra.mxu0 0.0
    %1393 = vmatprep.subr.mxu0 %v176
    %1394 = vmatpush1.msra.mxu0 %v175
    %1395 = vmatprep.subr.mxu0 %v172
    %1396 = vmatpush1.msra.mxu0 %v171
    %1397 = vmatprep.subr.mxu0 %v168
    %1398 = vmatpush1.msra.mxu0 %v167
    %1399 = vmatprep.subr.mxu0 %v164
    %1400 = vmatpush1.msra.mxu0 %v163
    %1401 = vmatprep.subr.mxu0 %v160
    %1402 = vmatpush1.msra.mxu0 %v159
    %1403 = vmatprep.subr.mxu0 %v156
    %1404 = vmatpush1.msra.mxu0 %v155
    %1405 = vmatprep.subr.mxu0 %v152
    %1406 = vmatpush1.msra.mxu0 %v151
    %1407 = vmatprep.subr.mxu0 %v148
    %1408 = vmatpush1.msra.mxu0 %v147
    %1409 = vmatprep.subr.mxu0 0.0
    %1410 = vmatpush2.msra.mxu0 0.0
    %1411 = vmatprep.subr.mxu0 0.0
    %1412 = vmatpush2.msra.mxu0 0.0
    %1413 = vmatprep.subr.mxu0 0.0
    %1414 = vmatpush2.msra.mxu0 0.0
    %1415 = vmatprep.subr.mxu0 0.0
    %1416 = vmatpush2.msra.mxu0 0.0
    %1417 = vmatprep.subr.mxu0 0.0
    %1418 = vmatpush2.msra.mxu0 0.0
    %1419 = vmatprep.subr.mxu0 0.0
    %1420 = vmatpush2.msra.mxu0 0.0
    %1421 = vmatprep.subr.mxu0 0.0
    %1422 = vmatpush2.msra.mxu0 0.0
    %1423 = vmatprep.subr.mxu0 0.0
    %1424 = vmatpush2.msra.mxu0 0.0
    %1425 = vmatprep.subr.mxu0 0.0
    %1426 = vmatpush2.msra.mxu0 0.0
    %1427 = vmatprep.subr.mxu0 0.0
    %1428 = vmatpush2.msra.mxu0 0.0
    %1429 = vmatprep.subr.mxu0 0.0
    %1430 = vmatpush2.msra.mxu0 0.0
    %1431 = vmatprep.subr.mxu0 0.0
    %1432 = vmatpush2.msra.mxu0 0.0
    %1433 = vmatprep.subr.mxu0 0.0
    %1434 = vmatpush2.msra.mxu0 0.0
    %1435 = vmatprep.subr.mxu0 0.0
    %1436 = vmatpush2.msra.mxu0 0.0
    %1437 = vmatprep.subr.mxu0 0.0
    %1438 = vmatpush2.msra.mxu0 0.0
    %1439 = vmatprep.subr.mxu0 0.0
    %1440 = vmatpush2.msra.mxu0 0.0
    %1441 = vmatprep.mubr.f32.mxu0 0.0
    %1442 = vmatmul.mubr.f32.gmra.mxu0 %v1375
    %v1443 = vpop.f32.mrf.mxu0
    %v1444 = vadd.f32 0.0, %v1443
    %v1445 = vpop.f32.mrf.mxu0
    %v1446 = vadd.f32 0.0, %v1445
    %1447 = vdwg.mxu0
    %1448 = vmatprep.subr.mxu0 0.0
    %1449 = vmatpush1.msra.mxu0 0.0
    %1450 = vmatprep.subr.mxu0 0.0
    %1451 = vmatpush1.msra.mxu0 0.0
    %1452 = vmatprep.subr.mxu0 0.0
    %1453 = vmatpush1.msra.mxu0 0.0
    %1454 = vmatprep.subr.mxu0 0.0
    %1455 = vmatpush1.msra.mxu0 0.0
    %1456 = vmatprep.subr.mxu0 0.0
    %1457 = vmatpush1.msra.mxu0 0.0
    %1458 = vmatprep.subr.mxu0 0.0
    %1459 = vmatpush1.msra.mxu0 0.0
    %1460 = vmatprep.subr.mxu0 0.0
    %1461 = vmatpush1.msra.mxu0 0.0
    %1462 = vmatprep.subr.mxu0 0.0
    %1463 = vmatpush1.msra.mxu0 0.0
    %1464 = vmatprep.subr.mxu0 %v178
    %1465 = vmatpush1.msra.mxu0 %v177
    %1466 = vmatprep.subr.mxu0 %v174
    %1467 = vmatpush1.msra.mxu0 %v173
    %1468 = vmatprep.subr.mxu0 %v170
    %1469 = vmatpush1.msra.mxu0 %v169
    %1470 = vmatprep.subr.mxu0 %v166
    %1471 = vmatpush1.msra.mxu0 %v165
    %1472 = vmatprep.subr.mxu0 %v162
    %1473 = vmatpush1.msra.mxu0 %v161
    %1474 = vmatprep.subr.mxu0 %v158
    %1475 = vmatpush1.msra.mxu0 %v157
    %1476 = vmatprep.subr.mxu0 %v154
    %1477 = vmatpush1.msra.mxu0 %v153
    %1478 = vmatprep.subr.mxu0 %v150
    %1479 = vmatpush1.msra.mxu0 %v149
    %1480 = vmatprep.subr.mxu0 0.0
    %1481 = vmatpush2.msra.mxu0 0.0
    %1482 = vmatprep.subr.mxu0 0.0
    %1483 = vmatpush2.msra.mxu0 0.0
    %1484 = vmatprep.subr.mxu0 0.0
    %1485 = vmatpush2.msra.mxu0 0.0
    %1486 = vmatprep.subr.mxu0 0.0
    %1487 = vmatpush2.msra.mxu0 0.0
    %1488 = vmatprep.subr.mxu0 0.0
    %1489 = vmatpush2.msra.mxu0 0.0
    %1490 = vmatprep.subr.mxu0 0.0
    %1491 = vmatpush2.msra.mxu0 0.0
    %1492 = vmatprep.subr.mxu0 0.0
    %1493 = vmatpush2.msra.mxu0 0.0
    %1494 = vmatprep.subr.mxu0 0.0
    %1495 = vmatpush2.msra.mxu0 0.0
    %1496 = vmatprep.subr.mxu0 0.0
    %1497 = vmatpush2.msra.mxu0 0.0
    %1498 = vmatprep.subr.mxu0 0.0
    %1499 = vmatpush2.msra.mxu0 0.0
    %1500 = vmatprep.subr.mxu0 0.0
    %1501 = vmatpush2.msra.mxu0 0.0
    %1502 = vmatprep.subr.mxu0 0.0
    %1503 = vmatpush2.msra.mxu0 0.0
    %1504 = vmatprep.subr.mxu0 0.0
    %1505 = vmatpush2.msra.mxu0 0.0
    %1506 = vmatprep.subr.mxu0 0.0
    %1507 = vmatpush2.msra.mxu0 0.0
    %1508 = vmatprep.subr.mxu0 0.0
    %1509 = vmatpush2.msra.mxu0 0.0
    %1510 = vmatprep.subr.mxu0 0.0
    %1511 = vmatpush2.msra.mxu0 0.0
    %1512 = vmatprep.mubr.f32.mxu0 0.0
    %1513 = vmatmul.mubr.f32.gmra.mxu0 %v1375
    %v1514 = vpop.f32.mrf.mxu0
    %v1515 = vadd.f32 0.0, %v1514
    %v1516 = vpop.f32.mrf.mxu0
    %v1517 = vadd.f32 0.0, %v1516
    %1518 = vdwg.mxu0
    %s1519 = scalar_lea.vmem %s2, 224
    %v1520 = vld [vmem:[%s1519] sm:$0xff]
    %v1521 = vld [vmem:[%s1519 + $0x8] sm:$0xff]
    %v1522 = vld [vmem:[%s1519 + $0x10] sm:$0xff]
    %v1523 = vld [vmem:[%s1519 + $0x18] sm:$0xff]
    %s1524 = scalar_lea.vmem %s2, 256
    %v1525 = vld [vmem:[%s1524] sm:$0xff]
    %v1526 = vld [vmem:[%s1524 + $0x8] sm:$0xff]
    %v1527 = vld [vmem:[%s1524 + $0x10] sm:$0xff]
    %v1528 = vld [vmem:[%s1524 + $0x18] sm:$0xff]
    %v1529 = vsub.f32 %v1515, %v1444
    %v1530 = vsub.f32 %v1517, %v1446
    %vm1531 = vcmask 15360
    %v1533 = vsel %vm1531, %v1525, 0
    %v1536 = vsel %vm1531, %v1526, 0
    %v1539 = vsel %vm1531, %v1527, 0
    %v1542 = vsel %vm1531, %v1528, 0
    %vm1544 = vcmask 1041408
    %v1546 = vsel %vm1544, %v1529, 0
    %v1549 = vsel %vm1544, %v1530, 0
    %1551 = vmatprep.subr.mxu0 0.0
    %1552 = vmatpush1.msra.mxu0 0.0
    %1553 = vmatprep.subr.mxu0 0.0
    %1554 = vmatpush1.msra.mxu0 0.0
    %1555 = vmatprep.subr.mxu0 0.0
    %1556 = vmatpush1.msra.mxu0 0.0
    %1557 = vmatprep.subr.mxu0 0.0
    %1558 = vmatpush1.msra.mxu0 0.0
    %1559 = vmatprep.subr.mxu0 0.0
    %1560 = vmatpush1.msra.mxu0 0.0
    %1561 = vmatprep.subr.mxu0 0.0
    %1562 = vmatpush1.msra.mxu0 0.0
    %1563 = vmatprep.subr.mxu0 0.0
    %1564 = vmatpush1.msra.mxu0 0.0
    %1565 = vmatprep.subr.mxu0 0.0
    %1566 = vmatpush1.msra.mxu0 0.0
    %1567 = vmatprep.subr.mxu0 0.0
    %1568 = vmatpush1.msra.mxu0 0.0
    %1569 = vmatprep.subr.mxu0 0.0
    %1570 = vmatpush1.msra.mxu0 0.0
    %1571 = vmatprep.subr.mxu0 0.0
    %1572 = vmatpush1.msra.mxu0 0.0
    %1573 = vmatprep.subr.mxu0 0.0
    %1574 = vmatpush1.msra.mxu0 0.0
    %1575 = vmatprep.subr.mxu0 0.0
    %1576 = vmatpush1.msra.mxu0 0.0
    %1577 = vmatprep.subr.mxu0 0.0
    %1578 = vmatpush1.msra.mxu0 0.0
    %1579 = vmatprep.subr.mxu0 0.0
    %1580 = vmatpush1.msra.mxu0 0.0
    %1581 = vmatprep.subr.mxu0 %v1549
    %1582 = vmatpush1.msra.mxu0 %v1546
    %1583 = vmatprep.subr.mxu0 0.0
    %1584 = vmatpush2.msra.mxu0 0.0
    %1585 = vmatprep.subr.mxu0 0.0
    %1586 = vmatpush2.msra.mxu0 0.0
    %1587 = vmatprep.subr.mxu0 0.0
    %1588 = vmatpush2.msra.mxu0 0.0
    %1589 = vmatprep.subr.mxu0 0.0
    %1590 = vmatpush2.msra.mxu0 0.0
    %1591 = vmatprep.subr.mxu0 0.0
    %1592 = vmatpush2.msra.mxu0 0.0
    %1593 = vmatprep.subr.mxu0 0.0
    %1594 = vmatpush2.msra.mxu0 0.0
    %1595 = vmatprep.subr.mxu0 0.0
    %1596 = vmatpush2.msra.mxu0 0.0
    %1597 = vmatprep.subr.mxu0 0.0
    %1598 = vmatpush2.msra.mxu0 0.0
    %1599 = vmatprep.subr.mxu0 0.0
    %1600 = vmatpush2.msra.mxu0 0.0
    %1601 = vmatprep.subr.mxu0 0.0
    %1602 = vmatpush2.msra.mxu0 0.0
    %1603 = vmatprep.subr.mxu0 0.0
    %1604 = vmatpush2.msra.mxu0 0.0
    %1605 = vmatprep.subr.mxu0 0.0
    %1606 = vmatpush2.msra.mxu0 0.0
    %1607 = vmatprep.subr.mxu0 0.0
    %1608 = vmatpush2.msra.mxu0 0.0
    %1609 = vmatprep.subr.mxu0 0.0
    %1610 = vmatpush2.msra.mxu0 0.0
    %1611 = vmatprep.subr.mxu0 0.0
    %1612 = vmatpush2.msra.mxu0 0.0
    %1613 = vmatprep.subr.mxu0 0.0
    %1614 = vmatpush2.msra.mxu0 0.0
    %1615 = vmatprep.mubr.f32.mxu0 0.0
    %1616 = vmatmul.mubr.f32.gmra.mxu0 %v1533
    %v1617 = vpop.f32.mrf.mxu0
    %v1618 = vadd.f32 0.0, %v1617
    %v1619 = vpop.f32.mrf.mxu0
    %v1620 = vadd.f32 0.0, %v1619
    %1621 = vmatprep.mubr.f32.mxu0 0.0
    %1622 = vmatmul.mubr.f32.gmra.mxu0 %v1536
    %v1623 = vpop.f32.mrf.mxu0
    %v1624 = vadd.f32 0.0, %v1623
    %v1625 = vpop.f32.mrf.mxu0
    %v1626 = vadd.f32 0.0, %v1625
    %1627 = vmatprep.mubr.f32.mxu0 0.0
    %1628 = vmatmul.mubr.f32.gmra.mxu0 %v1539
    %v1629 = vpop.f32.mrf.mxu0
    %v1630 = vadd.f32 0.0, %v1629
    %v1631 = vpop.f32.mrf.mxu0
    %v1632 = vadd.f32 0.0, %v1631
    %1633 = vmatprep.mubr.f32.mxu0 0.0
    %1634 = vmatmul.mubr.f32.gmra.mxu0 %v1542
    %v1635 = vpop.f32.mrf.mxu0
    %v1636 = vadd.f32 0.0, %v1635
    %v1637 = vpop.f32.mrf.mxu0
    %v1638 = vadd.f32 0.0, %v1637
    %1639 = vdwg.mxu0
    %v1641 = vsel %vm1531, %v1520, 0
    %v1644 = vsel %vm1531, %v1521, 0
    %v1647 = vsel %vm1531, %v1522, 0
    %v1650 = vsel %vm1531, %v1523, 0
    %v1653 = vsel %vm1544, %v1444, 0
    %v1656 = vsel %vm1544, %v1446, 0
    %1658 = vmatprep.subr.mxu0 0.0
    %1659 = vmatpush1.msra.mxu0 0.0
    %1660 = vmatprep.subr.mxu0 0.0
    %1661 = vmatpush1.msra.mxu0 0.0
    %1662 = vmatprep.subr.mxu0 0.0
    %1663 = vmatpush1.msra.mxu0 0.0
    %1664 = vmatprep.subr.mxu0 0.0
    %1665 = vmatpush1.msra.mxu0 0.0
    %1666 = vmatprep.subr.mxu0 0.0
    %1667 = vmatpush1.msra.mxu0 0.0
    %1668 = vmatprep.subr.mxu0 0.0
    %1669 = vmatpush1.msra.mxu0 0.0
    %1670 = vmatprep.subr.mxu0 0.0
    %1671 = vmatpush1.msra.mxu0 0.0
    %1672 = vmatprep.subr.mxu0 0.0
    %1673 = vmatpush1.msra.mxu0 0.0
    %1674 = vmatprep.subr.mxu0 0.0
    %1675 = vmatpush1.msra.mxu0 0.0
    %1676 = vmatprep.subr.mxu0 0.0
    %1677 = vmatpush1.msra.mxu0 0.0
    %1678 = vmatprep.subr.mxu0 0.0
    %1679 = vmatpush1.msra.mxu0 0.0
    %1680 = vmatprep.subr.mxu0 0.0
    %1681 = vmatpush1.msra.mxu0 0.0
    %1682 = vmatprep.subr.mxu0 0.0
    %1683 = vmatpush1.msra.mxu0 0.0
    %1684 = vmatprep.subr.mxu0 0.0
    %1685 = vmatpush1.msra.mxu0 0.0
    %1686 = vmatprep.subr.mxu0 0.0
    %1687 = vmatpush1.msra.mxu0 0.0
    %1688 = vmatprep.subr.mxu0 %v1656
    %1689 = vmatpush1.msra.mxu0 %v1653
    %1690 = vmatprep.subr.mxu0 0.0
    %1691 = vmatpush2.msra.mxu0 0.0
    %1692 = vmatprep.subr.mxu0 0.0
    %1693 = vmatpush2.msra.mxu0 0.0
    %1694 = vmatprep.subr.mxu0 0.0
    %1695 = vmatpush2.msra.mxu0 0.0
    %1696 = vmatprep.subr.mxu0 0.0
    %1697 = vmatpush2.msra.mxu0 0.0
    %1698 = vmatprep.subr.mxu0 0.0
    %1699 = vmatpush2.msra.mxu0 0.0
    %1700 = vmatprep.subr.mxu0 0.0
    %1701 = vmatpush2.msra.mxu0 0.0
    %1702 = vmatprep.subr.mxu0 0.0
    %1703 = vmatpush2.msra.mxu0 0.0
    %1704 = vmatprep.subr.mxu0 0.0
    %1705 = vmatpush2.msra.mxu0 0.0
    %1706 = vmatprep.subr.mxu0 0.0
    %1707 = vmatpush2.msra.mxu0 0.0
    %1708 = vmatprep.subr.mxu0 0.0
    %1709 = vmatpush2.msra.mxu0 0.0
    %1710 = vmatprep.subr.mxu0 0.0
    %1711 = vmatpush2.msra.mxu0 0.0
    %1712 = vmatprep.subr.mxu0 0.0
    %1713 = vmatpush2.msra.mxu0 0.0
    %1714 = vmatprep.subr.mxu0 0.0
    %1715 = vmatpush2.msra.mxu0 0.0
    %1716 = vmatprep.subr.mxu0 0.0
    %1717 = vmatpush2.msra.mxu0 0.0
    %1718 = vmatprep.subr.mxu0 0.0
    %1719 = vmatpush2.msra.mxu0 0.0
    %1720 = vmatprep.subr.mxu0 0.0
    %1721 = vmatpush2.msra.mxu0 0.0
    %1722 = vmatprep.mubr.f32.mxu0 0.0
    %1723 = vmatmul.mubr.f32.gmra.mxu0 %v1641
    %v1724 = vpop.f32.mrf.mxu0
    %v1725 = vadd.f32 %v1618, %v1724
    %v1726 = vpop.f32.mrf.mxu0
    %v1727 = vadd.f32 %v1620, %v1726
    %1728 = vmatprep.mubr.f32.mxu0 0.0
    %1729 = vmatmul.mubr.f32.gmra.mxu0 %v1644
    %v1730 = vpop.f32.mrf.mxu0
    %v1731 = vadd.f32 %v1624, %v1730
    %v1732 = vpop.f32.mrf.mxu0
    %v1733 = vadd.f32 %v1626, %v1732
    %1734 = vmatprep.mubr.f32.mxu0 0.0
    %1735 = vmatmul.mubr.f32.gmra.mxu0 %v1647
    %v1736 = vpop.f32.mrf.mxu0
    %v1737 = vadd.f32 %v1630, %v1736
    %v1738 = vpop.f32.mrf.mxu0
    %v1739 = vadd.f32 %v1632, %v1738
    %1740 = vmatprep.mubr.f32.mxu0 0.0
    %1741 = vmatmul.mubr.f32.gmra.mxu0 %v1650
    %v1742 = vpop.f32.mrf.mxu0
    %v1743 = vadd.f32 %v1636, %v1742
    %v1744 = vpop.f32.mrf.mxu0
    %v1745 = vadd.f32 %v1638, %v1744
    %1746 = vdwg.mxu0
    %s1747 = scalar_lea.vmem %s3, 192
    %v1748 = vld [vmem:[%s1747] sm:$0xff]
    %v1749 = vld [vmem:[%s1747 + $0x8] sm:$0xff]
    %v1750 = vld [vmem:[%s1747 + $0x10] sm:$0xff]
    %v1751 = vld [vmem:[%s1747 + $0x18] sm:$0xff]
    %1753 = vset.pattern.permute.xlu0 0
    %1754 = vperm.xlu0 %1753, %v1748
    %v1755 = vpop.permute.xlu0 %1754
    %1758 = vset.pattern.permute.xlu0 0
    %1759 = vperm.xlu0 %1758, %v1749
    %v1760 = vpop.permute.xlu0 %1759
    %1763 = vset.pattern.permute.xlu0 0
    %1764 = vperm.xlu0 %1763, %v1750
    %v1765 = vpop.permute.xlu0 %1764
    %1768 = vset.pattern.permute.xlu0 0
    %1769 = vperm.xlu0 %1768, %v1751
    %v1770 = vpop.permute.xlu0 %1769
    %v1772 = vadd.f32 %v1725, %v1755
    %v1773 = vadd.f32 %v1727, %v1755
    %v1774 = vadd.f32 %v1731, %v1760
    %v1775 = vadd.f32 %v1733, %v1760
    %v1776 = vadd.f32 %v1737, %v1765
    %v1777 = vadd.f32 %v1739, %v1765
    %v1778 = vadd.f32 %v1743, %v1770
    %v1779 = vadd.f32 %v1745, %v1770
    %v1780 = vmax.f32 %v1772, 0.0
    %v1781 = vmax.f32 %v1773, 0.0
    %v1782 = vmax.f32 %v1774, 0.0
    %v1783 = vmax.f32 %v1775, 0.0
    %v1784 = vmax.f32 %v1776, 0.0
    %v1785 = vmax.f32 %v1777, 0.0
    %v1786 = vmax.f32 %v1778, 0.0
    %v1787 = vmax.f32 %v1779, 0.0
    %s1788 = scalar_lea.vmem %s2, 288
    %v1789 = vld [vmem:[%s1788] sm:$0xff]
    %v1790 = vld [vmem:[%s1788 + $0x8] sm:$0xff]
    %v1791 = vld [vmem:[%s1788 + $0x10] sm:$0xff]
    %v1792 = vld [vmem:[%s1788 + $0x18] sm:$0xff]
    %s1793 = scalar_lea.vmem %s3, 224
    %v1794 = vld [vmem:[%s1793] sm:$0xff]
    %v1795 = vld [vmem:[%s1793 + $0x8] sm:$0xff]
    %v1796 = vld [vmem:[%s1793 + $0x10] sm:$0xff]
    %v1797 = vld [vmem:[%s1793 + $0x18] sm:$0xff]
    %1799 = vset.pattern.permute.xlu0 0
    %1800 = vperm.xlu0 %1799, %v1794
    %v1801 = vpop.permute.xlu0 %1800
    %1804 = vset.pattern.permute.xlu0 0
    %1805 = vperm.xlu0 %1804, %v1795
    %v1806 = vpop.permute.xlu0 %1805
    %1809 = vset.pattern.permute.xlu0 0
    %1810 = vperm.xlu0 %1809, %v1796
    %v1811 = vpop.permute.xlu0 %1810
    %1814 = vset.pattern.permute.xlu0 0
    %1815 = vperm.xlu0 %1814, %v1797
    %v1816 = vpop.permute.xlu0 %1815
    %v1819 = vsel %vm399, %v1789, 0
    %v1822 = vsel %vm399, %v1790, 0
    %v1825 = vsel %vm399, %v1791, 0
    %v1828 = vsel %vm399, %v1792, 0
    %1830 = vmatprep.subr.mxu0 0.0
    %1831 = vmatpush1.msra.mxu0 0.0
    %1832 = vmatprep.subr.mxu0 0.0
    %1833 = vmatpush1.msra.mxu0 0.0
    %1834 = vmatprep.subr.mxu0 0.0
    %1835 = vmatpush1.msra.mxu0 0.0
    %1836 = vmatprep.subr.mxu0 0.0
    %1837 = vmatpush1.msra.mxu0 0.0
    %1838 = vmatprep.subr.mxu0 0.0
    %1839 = vmatpush1.msra.mxu0 0.0
    %1840 = vmatprep.subr.mxu0 0.0
    %1841 = vmatpush1.msra.mxu0 0.0
    %1842 = vmatprep.subr.mxu0 0.0
    %1843 = vmatpush1.msra.mxu0 0.0
    %1844 = vmatprep.subr.mxu0 0.0
    %1845 = vmatpush1.msra.mxu0 0.0
    %1846 = vmatprep.subr.mxu0 0.0
    %1847 = vmatpush1.msra.mxu0 0.0
    %1848 = vmatprep.subr.mxu0 0.0
    %1849 = vmatpush1.msra.mxu0 0.0
    %1850 = vmatprep.subr.mxu0 0.0
    %1851 = vmatpush1.msra.mxu0 0.0
    %1852 = vmatprep.subr.mxu0 0.0
    %1853 = vmatpush1.msra.mxu0 0.0
    %1854 = vmatprep.subr.mxu0 %v1787
    %1855 = vmatpush1.msra.mxu0 %v1786
    %1856 = vmatprep.subr.mxu0 %v1785
    %1857 = vmatpush1.msra.mxu0 %v1784
    %1858 = vmatprep.subr.mxu0 %v1783
    %1859 = vmatpush1.msra.mxu0 %v1782
    %1860 = vmatprep.subr.mxu0 %v1781
    %1861 = vmatpush1.msra.mxu0 %v1780
    %1862 = vmatprep.subr.mxu0 0.0
    %1863 = vmatpush2.msra.mxu0 0.0
    %1864 = vmatprep.subr.mxu0 0.0
    %1865 = vmatpush2.msra.mxu0 0.0
    %1866 = vmatprep.subr.mxu0 0.0
    %1867 = vmatpush2.msra.mxu0 0.0
    %1868 = vmatprep.subr.mxu0 0.0
    %1869 = vmatpush2.msra.mxu0 0.0
    %1870 = vmatprep.subr.mxu0 0.0
    %1871 = vmatpush2.msra.mxu0 0.0
    %1872 = vmatprep.subr.mxu0 0.0
    %1873 = vmatpush2.msra.mxu0 0.0
    %1874 = vmatprep.subr.mxu0 0.0
    %1875 = vmatpush2.msra.mxu0 0.0
    %1876 = vmatprep.subr.mxu0 0.0
    %1877 = vmatpush2.msra.mxu0 0.0
    %1878 = vmatprep.subr.mxu0 0.0
    %1879 = vmatpush2.msra.mxu0 0.0
    %1880 = vmatprep.subr.mxu0 0.0
    %1881 = vmatpush2.msra.mxu0 0.0
    %1882 = vmatprep.subr.mxu0 0.0
    %1883 = vmatpush2.msra.mxu0 0.0
    %1884 = vmatprep.subr.mxu0 0.0
    %1885 = vmatpush2.msra.mxu0 0.0
    %1886 = vmatprep.subr.mxu0 0.0
    %1887 = vmatpush2.msra.mxu0 0.0
    %1888 = vmatprep.subr.mxu0 0.0
    %1889 = vmatpush2.msra.mxu0 0.0
    %1890 = vmatprep.subr.mxu0 0.0
    %1891 = vmatpush2.msra.mxu0 0.0
    %1892 = vmatprep.subr.mxu0 0.0
    %1893 = vmatpush2.msra.mxu0 0.0
    %1894 = vmatprep.mubr.f32.mxu0 0.0
    %1895 = vmatmul.mubr.f32.gmra.mxu0 %v1819
    %v1896 = vpop.f32.mrf.mxu0
    %v1897 = vadd.f32 %v1801, %v1896
    %v1898 = vpop.f32.mrf.mxu0
    %v1899 = vadd.f32 %v1801, %v1898
    %1900 = vmatprep.mubr.f32.mxu0 0.0
    %1901 = vmatmul.mubr.f32.gmra.mxu0 %v1822
    %v1902 = vpop.f32.mrf.mxu0
    %v1903 = vadd.f32 %v1806, %v1902
    %v1904 = vpop.f32.mrf.mxu0
    %v1905 = vadd.f32 %v1806, %v1904
    %1906 = vmatprep.mubr.f32.mxu0 0.0
    %1907 = vmatmul.mubr.f32.gmra.mxu0 %v1825
    %v1908 = vpop.f32.mrf.mxu0
    %v1909 = vadd.f32 %v1811, %v1908
    %v1910 = vpop.f32.mrf.mxu0
    %v1911 = vadd.f32 %v1811, %v1910
    %1912 = vmatprep.mubr.f32.mxu0 0.0
    %1913 = vmatmul.mubr.f32.gmra.mxu0 %v1828
    %v1914 = vpop.f32.mrf.mxu0
    %v1915 = vadd.f32 %v1816, %v1914
    %v1916 = vpop.f32.mrf.mxu0
    %v1917 = vadd.f32 %v1816, %v1916
    %1918 = vdwg.mxu0
    %v1919 = vmax.f32 %v1897, 0.0
    %v1920 = vmax.f32 %v1899, 0.0
    %v1921 = vmax.f32 %v1903, 0.0
    %v1922 = vmax.f32 %v1905, 0.0
    %v1923 = vmax.f32 %v1909, 0.0
    %v1924 = vmax.f32 %v1911, 0.0
    %v1925 = vmax.f32 %v1915, 0.0
    %v1926 = vmax.f32 %v1917, 0.0
    %s1927 = scalar_lea.vmem %s2, 320
    %v1928 = vld [vmem:[%s1927] sm:$0xff]
    %v1929 = vld [vmem:[%s1927 + $0x8] sm:$0xff]
    %v1930 = vld [vmem:[%s1927 + $0x10] sm:$0xff]
    %v1931 = vld [vmem:[%s1927 + $0x18] sm:$0xff]
    %s1932 = scalar_lea.vmem %s3, 256
    %v1933 = vld [vmem:[%s1932] sm:$0xff]
    %v1934 = vld [vmem:[%s1932 + $0x8] sm:$0xff]
    %v1935 = vld [vmem:[%s1932 + $0x10] sm:$0xff]
    %v1936 = vld [vmem:[%s1932 + $0x18] sm:$0xff]
    %1938 = vset.pattern.permute.xlu0 0
    %1939 = vperm.xlu0 %1938, %v1933
    %v1940 = vpop.permute.xlu0 %1939
    %1943 = vset.pattern.permute.xlu0 0
    %1944 = vperm.xlu0 %1943, %v1934
    %v1945 = vpop.permute.xlu0 %1944
    %1948 = vset.pattern.permute.xlu0 0
    %1949 = vperm.xlu0 %1948, %v1935
    %v1950 = vpop.permute.xlu0 %1949
    %1953 = vset.pattern.permute.xlu0 0
    %1954 = vperm.xlu0 %1953, %v1936
    %v1955 = vpop.permute.xlu0 %1954
    %v1958 = vsel %vm399, %v1928, 0
    %v1961 = vsel %vm399, %v1929, 0
    %v1964 = vsel %vm399, %v1930, 0
    %v1967 = vsel %vm399, %v1931, 0
    %1969 = vmatprep.subr.mxu0 0.0
    %1970 = vmatpush1.msra.mxu0 0.0
    %1971 = vmatprep.subr.mxu0 0.0
    %1972 = vmatpush1.msra.mxu0 0.0
    %1973 = vmatprep.subr.mxu0 0.0
    %1974 = vmatpush1.msra.mxu0 0.0
    %1975 = vmatprep.subr.mxu0 0.0
    %1976 = vmatpush1.msra.mxu0 0.0
    %1977 = vmatprep.subr.mxu0 0.0
    %1978 = vmatpush1.msra.mxu0 0.0
    %1979 = vmatprep.subr.mxu0 0.0
    %1980 = vmatpush1.msra.mxu0 0.0
    %1981 = vmatprep.subr.mxu0 0.0
    %1982 = vmatpush1.msra.mxu0 0.0
    %1983 = vmatprep.subr.mxu0 0.0
    %1984 = vmatpush1.msra.mxu0 0.0
    %1985 = vmatprep.subr.mxu0 0.0
    %1986 = vmatpush1.msra.mxu0 0.0
    %1987 = vmatprep.subr.mxu0 0.0
    %1988 = vmatpush1.msra.mxu0 0.0
    %1989 = vmatprep.subr.mxu0 0.0
    %1990 = vmatpush1.msra.mxu0 0.0
    %1991 = vmatprep.subr.mxu0 0.0
    %1992 = vmatpush1.msra.mxu0 0.0
    %1993 = vmatprep.subr.mxu0 %v1926
    %1994 = vmatpush1.msra.mxu0 %v1925
    %1995 = vmatprep.subr.mxu0 %v1924
    %1996 = vmatpush1.msra.mxu0 %v1923
    %1997 = vmatprep.subr.mxu0 %v1922
    %1998 = vmatpush1.msra.mxu0 %v1921
    %1999 = vmatprep.subr.mxu0 %v1920
    %2000 = vmatpush1.msra.mxu0 %v1919
    %2001 = vmatprep.subr.mxu0 0.0
    %2002 = vmatpush2.msra.mxu0 0.0
    %2003 = vmatprep.subr.mxu0 0.0
    %2004 = vmatpush2.msra.mxu0 0.0
    %2005 = vmatprep.subr.mxu0 0.0
    %2006 = vmatpush2.msra.mxu0 0.0
    %2007 = vmatprep.subr.mxu0 0.0
    %2008 = vmatpush2.msra.mxu0 0.0
    %2009 = vmatprep.subr.mxu0 0.0
    %2010 = vmatpush2.msra.mxu0 0.0
    %2011 = vmatprep.subr.mxu0 0.0
    %2012 = vmatpush2.msra.mxu0 0.0
    %2013 = vmatprep.subr.mxu0 0.0
    %2014 = vmatpush2.msra.mxu0 0.0
    %2015 = vmatprep.subr.mxu0 0.0
    %2016 = vmatpush2.msra.mxu0 0.0
    %2017 = vmatprep.subr.mxu0 0.0
    %2018 = vmatpush2.msra.mxu0 0.0
    %2019 = vmatprep.subr.mxu0 0.0
    %2020 = vmatpush2.msra.mxu0 0.0
    %2021 = vmatprep.subr.mxu0 0.0
    %2022 = vmatpush2.msra.mxu0 0.0
    %2023 = vmatprep.subr.mxu0 0.0
    %2024 = vmatpush2.msra.mxu0 0.0
    %2025 = vmatprep.subr.mxu0 0.0
    %2026 = vmatpush2.msra.mxu0 0.0
    %2027 = vmatprep.subr.mxu0 0.0
    %2028 = vmatpush2.msra.mxu0 0.0
    %2029 = vmatprep.subr.mxu0 0.0
    %2030 = vmatpush2.msra.mxu0 0.0
    %2031 = vmatprep.subr.mxu0 0.0
    %2032 = vmatpush2.msra.mxu0 0.0
    %2033 = vmatprep.mubr.f32.mxu0 0.0
    %2034 = vmatmul.mubr.f32.gmra.mxu0 %v1958
    %v2035 = vpop.f32.mrf.mxu0
    %v2036 = vadd.f32 %v1940, %v2035
    %v2037 = vpop.f32.mrf.mxu0
    %v2038 = vadd.f32 %v1940, %v2037
    %2039 = vmatprep.mubr.f32.mxu0 0.0
    %2040 = vmatmul.mubr.f32.gmra.mxu0 %v1961
    %v2041 = vpop.f32.mrf.mxu0
    %v2042 = vadd.f32 %v1945, %v2041
    %v2043 = vpop.f32.mrf.mxu0
    %v2044 = vadd.f32 %v1945, %v2043
    %2045 = vmatprep.mubr.f32.mxu0 0.0
    %2046 = vmatmul.mubr.f32.gmra.mxu0 %v1964
    %v2047 = vpop.f32.mrf.mxu0
    %v2048 = vadd.f32 %v1950, %v2047
    %v2049 = vpop.f32.mrf.mxu0
    %v2050 = vadd.f32 %v1950, %v2049
    %2051 = vmatprep.mubr.f32.mxu0 0.0
    %2052 = vmatmul.mubr.f32.gmra.mxu0 %v1967
    %v2053 = vpop.f32.mrf.mxu0
    %v2054 = vadd.f32 %v1955, %v2053
    %v2055 = vpop.f32.mrf.mxu0
    %v2056 = vadd.f32 %v1955, %v2055
    %2057 = vdwg.mxu0
    %v2058 = vmax.f32 %v2036, 0.0
    %v2059 = vmax.f32 %v2038, 0.0
    %v2060 = vmax.f32 %v2042, 0.0
    %v2061 = vmax.f32 %v2044, 0.0
    %v2062 = vmax.f32 %v2048, 0.0
    %v2063 = vmax.f32 %v2050, 0.0
    %v2064 = vmax.f32 %v2054, 0.0
    %v2065 = vmax.f32 %v2056, 0.0
    %2066 = vmatprep.subr.mxu0 0.0
    %2067 = vmatpush1.xpose.msra.mxu0 0.0
    %2068 = vmatprep.subr.mxu0 0.0
    %2069 = vmatpush1.xpose.msra.mxu0 0.0
    %2070 = vmatprep.subr.mxu0 0.0
    %2071 = vmatpush1.xpose.msra.mxu0 0.0
    %2072 = vmatprep.subr.mxu0 0.0
    %2073 = vmatpush1.xpose.msra.mxu0 0.0
    %2074 = vmatprep.subr.mxu0 0.0
    %2075 = vmatpush1.xpose.msra.mxu0 0.0
    %2076 = vmatprep.subr.mxu0 0.0
    %2077 = vmatpush1.xpose.msra.mxu0 0.0
    %2078 = vmatprep.subr.mxu0 0.0
    %2079 = vmatpush1.xpose.msra.mxu0 0.0
    %2080 = vmatprep.subr.mxu0 0.0
    %2081 = vmatpush1.xpose.msra.mxu0 0.0
    %2082 = vmatprep.subr.mxu0 %v234
    %2083 = vmatpush1.xpose.msra.mxu0 %v233
    %2084 = vmatprep.subr.mxu0 %v232
    %2085 = vmatpush1.xpose.msra.mxu0 %v231
    %2086 = vmatprep.subr.mxu0 %v230
    %2087 = vmatpush1.xpose.msra.mxu0 %v229
    %2088 = vmatprep.subr.mxu0 %v228
    %2089 = vmatpush1.xpose.msra.mxu0 %v227
    %2090 = vmatprep.subr.mxu0 %v226
    %2091 = vmatpush1.xpose.msra.mxu0 %v225
    %2092 = vmatprep.subr.mxu0 %v224
    %2093 = vmatpush1.xpose.msra.mxu0 %v223
    %2094 = vmatprep.subr.mxu0 %v222
    %2095 = vmatpush1.xpose.msra.mxu0 %v221
    %2096 = vmatprep.subr.mxu0 %v220
    %2097 = vmatpush1.xpose.msra.mxu0 %v219
    %2098 = vmatprep.subr.mxu0 0.0
    %2099 = vmatpush2.xpose.msra.mxu0 0.0
    %2100 = vmatprep.subr.mxu0 0.0
    %2101 = vmatpush2.xpose.msra.mxu0 0.0
    %2102 = vmatprep.subr.mxu0 0.0
    %2103 = vmatpush2.xpose.msra.mxu0 0.0
    %2104 = vmatprep.subr.mxu0 0.0
    %2105 = vmatpush2.xpose.msra.mxu0 0.0
    %2106 = vmatprep.subr.mxu0 0.0
    %2107 = vmatpush2.xpose.msra.mxu0 0.0
    %2108 = vmatprep.subr.mxu0 0.0
    %2109 = vmatpush2.xpose.msra.mxu0 0.0
    %2110 = vmatprep.subr.mxu0 0.0
    %2111 = vmatpush2.xpose.msra.mxu0 0.0
    %2112 = vmatprep.subr.mxu0 0.0
    %2113 = vmatpush2.xpose.msra.mxu0 0.0
    %2114 = vmatprep.subr.mxu0 0.0
    %2115 = vmatpush2.xpose.msra.mxu0 0.0
    %2116 = vmatprep.subr.mxu0 0.0
    %2117 = vmatpush2.xpose.msra.mxu0 0.0
    %2118 = vmatprep.subr.mxu0 0.0
    %2119 = vmatpush2.xpose.msra.mxu0 0.0
    %2120 = vmatprep.subr.mxu0 0.0
    %2121 = vmatpush2.xpose.msra.mxu0 0.0
    %2122 = vmatprep.subr.mxu0 0.0
    %2123 = vmatpush2.xpose.msra.mxu0 0.0
    %2124 = vmatprep.subr.mxu0 0.0
    %2125 = vmatpush2.xpose.msra.mxu0 0.0
    %2126 = vmatprep.subr.mxu0 0.0
    %2127 = vmatpush2.xpose.msra.mxu0 0.0
    %2128 = vmatprep.subr.mxu0 0.0
    %2129 = vmatpush2.xpose.msra.mxu0 0.0
    %2130 = vmatprep.mubr.f32.mxu0 %v2059
    %2131 = vmatmul.mubr.f32.gmra.mxu0 %v2058
    %v2132 = vpop.f32.mrf.mxu0
    %v2133 = vadd.f32 0.0, %v2132
    %v2134 = vpop.f32.mrf.mxu0
    %2135 = vmatprep.mubr.f32.mxu0 %v2061
    %2136 = vmatmul.mubr.f32.gmra.mxu0 %v2060
    %v2137 = vpop.f32.mrf.mxu0
    %v2138 = vadd.f32 0.0, %v2137
    %v2139 = vpop.f32.mrf.mxu0
    %2140 = vmatprep.mubr.f32.mxu0 %v2063
    %2141 = vmatmul.mubr.f32.gmra.mxu0 %v2062
    %v2142 = vpop.f32.mrf.mxu0
    %v2143 = vadd.f32 0.0, %v2142
    %v2144 = vpop.f32.mrf.mxu0
    %2145 = vmatprep.mubr.f32.mxu0 %v2065
    %2146 = vmatmul.mubr.f32.gmra.mxu0 %v2064
    %v2147 = vpop.f32.mrf.mxu0
    %v2148 = vadd.f32 0.0, %v2147
    %v2149 = vpop.f32.mrf.mxu0
    %2150 = vdwg.mxu0
    %s2151 = scalar_lea.vmem %s2, 352
    %v2152 = vld [vmem:[%s2151] sm:$0xff]
    %v2153 = vld [vmem:[%s2151 + $0x8] sm:$0xff]
    %v2154 = vld [vmem:[%s2151 + $0x10] sm:$0xff]
    %v2155 = vld [vmem:[%s2151 + $0x18] sm:$0xff]
    %s2156 = scalar_lea.vmem %s3, 288
    %v2157 = vld [vmem:[%s2156] sm:$0xff]
    %v2158 = vld [vmem:[%s2156 + $0x8] sm:$0xff]
    %v2159 = vld [vmem:[%s2156 + $0x10] sm:$0xff]
    %v2160 = vld [vmem:[%s2156 + $0x18] sm:$0xff]
    %2162 = vset.pattern.permute.xlu0 0
    %2163 = vperm.xlu0 %2162, %v2157
    %v2164 = vpop.permute.xlu0 %2163
    %2167 = vset.pattern.permute.xlu0 0
    %2168 = vperm.xlu0 %2167, %v2158
    %v2169 = vpop.permute.xlu0 %2168
    %2172 = vset.pattern.permute.xlu0 0
    %2173 = vperm.xlu0 %2172, %v2159
    %v2174 = vpop.permute.xlu0 %2173
    %2177 = vset.pattern.permute.xlu0 0
    %2178 = vperm.xlu0 %2177, %v2160
    %v2179 = vpop.permute.xlu0 %2178
    %v2182 = vsel %vm399, %v2152, 0
    %v2185 = vsel %vm399, %v2153, 0
    %v2188 = vsel %vm399, %v2154, 0
    %v2191 = vsel %vm399, %v2155, 0
    %2193 = vmatprep.subr.mxu0 0.0
    %2194 = vmatpush1.msra.mxu0 0.0
    %2195 = vmatprep.subr.mxu0 0.0
    %2196 = vmatpush1.msra.mxu0 0.0
    %2197 = vmatprep.subr.mxu0 0.0
    %2198 = vmatpush1.msra.mxu0 0.0
    %2199 = vmatprep.subr.mxu0 0.0
    %2200 = vmatpush1.msra.mxu0 0.0
    %2201 = vmatprep.subr.mxu0 0.0
    %2202 = vmatpush1.msra.mxu0 0.0
    %2203 = vmatprep.subr.mxu0 0.0
    %2204 = vmatpush1.msra.mxu0 0.0
    %2205 = vmatprep.subr.mxu0 0.0
    %2206 = vmatpush1.msra.mxu0 0.0
    %2207 = vmatprep.subr.mxu0 0.0
    %2208 = vmatpush1.msra.mxu0 0.0
    %2209 = vmatprep.subr.mxu0 0.0
    %2210 = vmatpush1.msra.mxu0 0.0
    %2211 = vmatprep.subr.mxu0 0.0
    %2212 = vmatpush1.msra.mxu0 0.0
    %2213 = vmatprep.subr.mxu0 0.0
    %2214 = vmatpush1.msra.mxu0 0.0
    %2215 = vmatprep.subr.mxu0 0.0
    %2216 = vmatpush1.msra.mxu0 0.0
    %2217 = vmatprep.subr.mxu0 0.0
    %2218 = vmatpush1.msra.mxu0 %v2148
    %2219 = vmatprep.subr.mxu0 0.0
    %2220 = vmatpush1.msra.mxu0 %v2143
    %2221 = vmatprep.subr.mxu0 0.0
    %2222 = vmatpush1.msra.mxu0 %v2138
    %2223 = vmatprep.subr.mxu0 0.0
    %2224 = vmatpush1.msra.mxu0 %v2133
    %2225 = vmatprep.subr.mxu0 0.0
    %2226 = vmatpush2.msra.mxu0 0.0
    %2227 = vmatprep.subr.mxu0 0.0
    %2228 = vmatpush2.msra.mxu0 0.0
    %2229 = vmatprep.subr.mxu0 0.0
    %2230 = vmatpush2.msra.mxu0 0.0
    %2231 = vmatprep.subr.mxu0 0.0
    %2232 = vmatpush2.msra.mxu0 0.0
    %2233 = vmatprep.subr.mxu0 0.0
    %2234 = vmatpush2.msra.mxu0 0.0
    %2235 = vmatprep.subr.mxu0 0.0
    %2236 = vmatpush2.msra.mxu0 0.0
    %2237 = vmatprep.subr.mxu0 0.0
    %2238 = vmatpush2.msra.mxu0 0.0
    %2239 = vmatprep.subr.mxu0 0.0
    %2240 = vmatpush2.msra.mxu0 0.0
    %2241 = vmatprep.subr.mxu0 0.0
    %2242 = vmatpush2.msra.mxu0 0.0
    %2243 = vmatprep.subr.mxu0 0.0
    %2244 = vmatpush2.msra.mxu0 0.0
    %2245 = vmatprep.subr.mxu0 0.0
    %2246 = vmatpush2.msra.mxu0 0.0
    %2247 = vmatprep.subr.mxu0 0.0
    %2248 = vmatpush2.msra.mxu0 0.0
    %2249 = vmatprep.subr.mxu0 0.0
    %2250 = vmatpush2.msra.mxu0 0.0
    %2251 = vmatprep.subr.mxu0 0.0
    %2252 = vmatpush2.msra.mxu0 0.0
    %2253 = vmatprep.subr.mxu0 0.0
    %2254 = vmatpush2.msra.mxu0 0.0
    %2255 = vmatprep.subr.mxu0 0.0
    %2256 = vmatpush2.msra.mxu0 0.0
    %2257 = vmatprep.mubr.f32.mxu0 0.0
    %2258 = vmatmul.mubr.f32.gmra.mxu0 %v2182
    %v2259 = vpop.f32.mrf.mxu0
    %v2260 = vadd.f32 %v2164, %v2259
    %v2261 = vpop.f32.mrf.mxu0
    %2262 = vmatprep.mubr.f32.mxu0 0.0
    %2263 = vmatmul.mubr.f32.gmra.mxu0 %v2185
    %v2264 = vpop.f32.mrf.mxu0
    %v2265 = vadd.f32 %v2169, %v2264
    %v2266 = vpop.f32.mrf.mxu0
    %2267 = vmatprep.mubr.f32.mxu0 0.0
    %2268 = vmatmul.mubr.f32.gmra.mxu0 %v2188
    %v2269 = vpop.f32.mrf.mxu0
    %v2270 = vadd.f32 %v2174, %v2269
    %v2271 = vpop.f32.mrf.mxu0
    %2272 = vmatprep.mubr.f32.mxu0 0.0
    %2273 = vmatmul.mubr.f32.gmra.mxu0 %v2191
    %v2274 = vpop.f32.mrf.mxu0
    %v2275 = vadd.f32 %v2179, %v2274
    %v2276 = vpop.f32.mrf.mxu0
    %2277 = vdwg.mxu0
    %v2278 = vmax.f32 %v2260, 0.0
    %v2279 = vmax.f32 %v2265, 0.0
    %v2280 = vmax.f32 %v2270, 0.0
    %v2281 = vmax.f32 %v2275, 0.0
    %s2282 = scalar_lea.vmem %s2, 384
    %v2283 = vld [vmem:[%s2282] sm:$0xff]
    %v2284 = vld [vmem:[%s2282 + $0x8] sm:$0xff]
    %v2285 = vld [vmem:[%s2282 + $0x10] sm:$0xff]
    %v2286 = vld [vmem:[%s2282 + $0x18] sm:$0xff]
    %s2287 = scalar_lea.vmem %s3, 320
    %v2288 = vld [vmem:[%s2287] sm:$0xff]
    %v2289 = vld [vmem:[%s2287 + $0x8] sm:$0xff]
    %v2290 = vld [vmem:[%s2287 + $0x10] sm:$0xff]
    %v2291 = vld [vmem:[%s2287 + $0x18] sm:$0xff]
    %2293 = vset.pattern.permute.xlu0 0
    %2294 = vperm.xlu0 %2293, %v2288
    %v2295 = vpop.permute.xlu0 %2294
    %2298 = vset.pattern.permute.xlu0 0
    %2299 = vperm.xlu0 %2298, %v2289
    %v2300 = vpop.permute.xlu0 %2299
    %2303 = vset.pattern.permute.xlu0 0
    %2304 = vperm.xlu0 %2303, %v2290
    %v2305 = vpop.permute.xlu0 %2304
    %2308 = vset.pattern.permute.xlu0 0
    %2309 = vperm.xlu0 %2308, %v2291
    %v2310 = vpop.permute.xlu0 %2309
    %v2313 = vsel %vm399, %v2283, 0
    %v2316 = vsel %vm399, %v2284, 0
    %v2319 = vsel %vm399, %v2285, 0
    %v2322 = vsel %vm399, %v2286, 0
    %2324 = vmatprep.subr.mxu0 0.0
    %2325 = vmatpush1.msra.mxu0 0.0
    %2326 = vmatprep.subr.mxu0 0.0
    %2327 = vmatpush1.msra.mxu0 0.0
    %2328 = vmatprep.subr.mxu0 0.0
    %2329 = vmatpush1.msra.mxu0 0.0
    %2330 = vmatprep.subr.mxu0 0.0
    %2331 = vmatpush1.msra.mxu0 0.0
    %2332 = vmatprep.subr.mxu0 0.0
    %2333 = vmatpush1.msra.mxu0 0.0
    %2334 = vmatprep.subr.mxu0 0.0
    %2335 = vmatpush1.msra.mxu0 0.0
    %2336 = vmatprep.subr.mxu0 0.0
    %2337 = vmatpush1.msra.mxu0 0.0
    %2338 = vmatprep.subr.mxu0 0.0
    %2339 = vmatpush1.msra.mxu0 0.0
    %2340 = vmatprep.subr.mxu0 0.0
    %2341 = vmatpush1.msra.mxu0 0.0
    %2342 = vmatprep.subr.mxu0 0.0
    %2343 = vmatpush1.msra.mxu0 0.0
    %2344 = vmatprep.subr.mxu0 0.0
    %2345 = vmatpush1.msra.mxu0 0.0
    %2346 = vmatprep.subr.mxu0 0.0
    %2347 = vmatpush1.msra.mxu0 0.0
    %2348 = vmatprep.subr.mxu0 0.0
    %2349 = vmatpush1.msra.mxu0 %v2281
    %2350 = vmatprep.subr.mxu0 0.0
    %2351 = vmatpush1.msra.mxu0 %v2280
    %2352 = vmatprep.subr.mxu0 0.0
    %2353 = vmatpush1.msra.mxu0 %v2279
    %2354 = vmatprep.subr.mxu0 0.0
    %2355 = vmatpush1.msra.mxu0 %v2278
    %2356 = vmatprep.subr.mxu0 0.0
    %2357 = vmatpush2.msra.mxu0 0.0
    %2358 = vmatprep.subr.mxu0 0.0
    %2359 = vmatpush2.msra.mxu0 0.0
    %2360 = vmatprep.subr.mxu0 0.0
    %2361 = vmatpush2.msra.mxu0 0.0
    %2362 = vmatprep.subr.mxu0 0.0
    %2363 = vmatpush2.msra.mxu0 0.0
    %2364 = vmatprep.subr.mxu0 0.0
    %2365 = vmatpush2.msra.mxu0 0.0
    %2366 = vmatprep.subr.mxu0 0.0
    %2367 = vmatpush2.msra.mxu0 0.0
    %2368 = vmatprep.subr.mxu0 0.0
    %2369 = vmatpush2.msra.mxu0 0.0
    %2370 = vmatprep.subr.mxu0 0.0
    %2371 = vmatpush2.msra.mxu0 0.0
    %2372 = vmatprep.subr.mxu0 0.0
    %2373 = vmatpush2.msra.mxu0 0.0
    %2374 = vmatprep.subr.mxu0 0.0
    %2375 = vmatpush2.msra.mxu0 0.0
    %2376 = vmatprep.subr.mxu0 0.0
    %2377 = vmatpush2.msra.mxu0 0.0
    %2378 = vmatprep.subr.mxu0 0.0
    %2379 = vmatpush2.msra.mxu0 0.0
    %2380 = vmatprep.subr.mxu0 0.0
    %2381 = vmatpush2.msra.mxu0 0.0
    %2382 = vmatprep.subr.mxu0 0.0
    %2383 = vmatpush2.msra.mxu0 0.0
    %2384 = vmatprep.subr.mxu0 0.0
    %2385 = vmatpush2.msra.mxu0 0.0
    %2386 = vmatprep.subr.mxu0 0.0
    %2387 = vmatpush2.msra.mxu0 0.0
    %2388 = vmatprep.mubr.f32.mxu0 0.0
    %2389 = vmatmul.mubr.f32.gmra.mxu0 %v2313
    %v2390 = vpop.f32.mrf.mxu0
    %v2391 = vadd.f32 %v2295, %v2390
    %v2392 = vpop.f32.mrf.mxu0
    %2393 = vmatprep.mubr.f32.mxu0 0.0
    %2394 = vmatmul.mubr.f32.gmra.mxu0 %v2316
    %v2395 = vpop.f32.mrf.mxu0
    %v2396 = vadd.f32 %v2300, %v2395
    %v2397 = vpop.f32.mrf.mxu0
    %2398 = vmatprep.mubr.f32.mxu0 0.0
    %2399 = vmatmul.mubr.f32.gmra.mxu0 %v2319
    %v2400 = vpop.f32.mrf.mxu0
    %v2401 = vadd.f32 %v2305, %v2400
    %v2402 = vpop.f32.mrf.mxu0
    %2403 = vmatprep.mubr.f32.mxu0 0.0
    %2404 = vmatmul.mubr.f32.gmra.mxu0 %v2322
    %v2405 = vpop.f32.mrf.mxu0
    %v2406 = vadd.f32 %v2310, %v2405
    %v2407 = vpop.f32.mrf.mxu0
    %2408 = vdwg.mxu0
    %v2409 = vmax.f32 %v2391, 0.0
    %v2410 = vmax.f32 %v2396, 0.0
    %v2411 = vmax.f32 %v2401, 0.0
    %v2412 = vmax.f32 %v2406, 0.0
    %s2413 = scalar_lea.vmem %s2, 416
    %v2414 = vld [vmem:[%s2413] sm:$0xf]
    %s2415 = scalar_lea.vmem %s3, 352
    %v2416 = vld [vmem:[%s2415] sm:$0xf]
    %2418 = vset.pattern.permute.xlu0 0
    %2419 = vperm.xlu0 %2418, %v2416
    %v2420 = vpop.permute.xlu0 %2419
    %v2423 = vsel %vm399, %v2414, 0
    %2425 = vmatprep.subr.mxu0 0.0
    %2426 = vmatpush1.msra.mxu0 0.0
    %2427 = vmatprep.subr.mxu0 0.0
    %2428 = vmatpush1.msra.mxu0 0.0
    %2429 = vmatprep.subr.mxu0 0.0
    %2430 = vmatpush1.msra.mxu0 0.0
    %2431 = vmatprep.subr.mxu0 0.0
    %2432 = vmatpush1.msra.mxu0 0.0
    %2433 = vmatprep.subr.mxu0 0.0
    %2434 = vmatpush1.msra.mxu0 0.0
    %2435 = vmatprep.subr.mxu0 0.0
    %2436 = vmatpush1.msra.mxu0 0.0
    %2437 = vmatprep.subr.mxu0 0.0
    %2438 = vmatpush1.msra.mxu0 0.0
    %2439 = vmatprep.subr.mxu0 0.0
    %2440 = vmatpush1.msra.mxu0 0.0
    %2441 = vmatprep.subr.mxu0 0.0
    %2442 = vmatpush1.msra.mxu0 0.0
    %2443 = vmatprep.subr.mxu0 0.0
    %2444 = vmatpush1.msra.mxu0 0.0
    %2445 = vmatprep.subr.mxu0 0.0
    %2446 = vmatpush1.msra.mxu0 0.0
    %2447 = vmatprep.subr.mxu0 0.0
    %2448 = vmatpush1.msra.mxu0 0.0
    %2449 = vmatprep.subr.mxu0 0.0
    %2450 = vmatpush1.msra.mxu0 %v2412
    %2451 = vmatprep.subr.mxu0 0.0
    %2452 = vmatpush1.msra.mxu0 %v2411
    %2453 = vmatprep.subr.mxu0 0.0
    %2454 = vmatpush1.msra.mxu0 %v2410
    %2455 = vmatprep.subr.mxu0 0.0
    %2456 = vmatpush1.msra.mxu0 %v2409
    %2457 = vmatprep.subr.mxu0 0.0
    %2458 = vmatpush2.msra.mxu0 0.0
    %2459 = vmatprep.subr.mxu0 0.0
    %2460 = vmatpush2.msra.mxu0 0.0
    %2461 = vmatprep.subr.mxu0 0.0
    %2462 = vmatpush2.msra.mxu0 0.0
    %2463 = vmatprep.subr.mxu0 0.0
    %2464 = vmatpush2.msra.mxu0 0.0
    %2465 = vmatprep.subr.mxu0 0.0
    %2466 = vmatpush2.msra.mxu0 0.0
    %2467 = vmatprep.subr.mxu0 0.0
    %2468 = vmatpush2.msra.mxu0 0.0
    %2469 = vmatprep.subr.mxu0 0.0
    %2470 = vmatpush2.msra.mxu0 0.0
    %2471 = vmatprep.subr.mxu0 0.0
    %2472 = vmatpush2.msra.mxu0 0.0
    %2473 = vmatprep.subr.mxu0 0.0
    %2474 = vmatpush2.msra.mxu0 0.0
    %2475 = vmatprep.subr.mxu0 0.0
    %2476 = vmatpush2.msra.mxu0 0.0
    %2477 = vmatprep.subr.mxu0 0.0
    %2478 = vmatpush2.msra.mxu0 0.0
    %2479 = vmatprep.subr.mxu0 0.0
    %2480 = vmatpush2.msra.mxu0 0.0
    %2481 = vmatprep.subr.mxu0 0.0
    %2482 = vmatpush2.msra.mxu0 0.0
    %2483 = vmatprep.subr.mxu0 0.0
    %2484 = vmatpush2.msra.mxu0 0.0
    %2485 = vmatprep.subr.mxu0 0.0
    %2486 = vmatpush2.msra.mxu0 0.0
    %2487 = vmatprep.subr.mxu0 0.0
    %2488 = vmatpush2.msra.mxu0 0.0
    %2489 = vmatprep.mubr.f32.mxu0 0.0
    %2490 = vmatmul.mubr.f32.gmra.mxu0 %v2423
    %v2491 = vpop.f32.mrf.mxu0
    %v2492 = vadd.f32 %v2420, %v2491
    %v2493 = vpop.f32.mrf.mxu0
    %2494 = vdwg.mxu0
    %2495 = vst.msk [vmem:[#allocation2] sm:$0xf] %vm19, %v2492
    // Predicated region
    $region18: #{edgenet_embed_forward.1} parent=1 // pred_check
      _
    $region19: #{edgenet_embed_forward.1} parent=1 // pred_check_branch
      %2497 = sbr.rel (0) target = $region21
    $region20: #{edgenet_embed_forward.1} parent=1 // pred_region
      %s2499 = ssub.s32 64, 64
      %2500 = vsyncadd [#allocation3], %s2499
      %s2502 = sshll.u32 [#allocation2], 4
      %s2503 = int_to_ptr.vmem [resolvable:$true] %s2502
      %2505 = dma.vmem_to_hbm [thread:$0]  %s2503, 64, %s4, [#allocation3]
    $region21: #{edgenet_embed_forward.1} parent=1 // pred_fallthru
      _
    // Predicated region
    $region22: #{edgenet_embed_forward.1} parent=1 // pred_check
      _
    $region23: #{edgenet_embed_forward.1} parent=1 // pred_check_branch
      %2507 = sbr.rel (0) target = $region25
    $region24: #{edgenet_embed_forward.1} parent=1 // pred_region
      %2508 = dma.done [#allocation3], 64
    $region25: #{edgenet_embed_forward.1} parent=1 // pred_fallthru
      _
    %2509 = vsyncpa [#allocation3], 1

</llo_original>
